<compile_context>
chip_gen: v7x
topology: tpu7x:2x2x1
jax: 0.10.0
libtpu: 0.0.40
codegen_flags: <defaults>
</compile_context>

<pallas_src>
import jax
import jax.numpy as jnp
from jax import lax
from jax.experimental import pallas as pl
from jax.experimental.pallas import tpu as pltpu


# ----------------------------------------------------------------------------
# Kernel: 3x3 "same" conv (no bias) on one row tile of one NHWC image.
#   x_ref  : (1, H, W, Cin)     full unpadded image (resident across row tiles)
#   w_ref  : (3, 3*Cin, Cout)   w_ref[dx][dy*Cin + c, o] = W_torch[o, c, dy, dx]
#   o_ref  : (1, th, W, Cout)   output row tile
#   xh_ref : (th+2, W, Cin)     VMEM scratch: row tile + 1-row vertical halo
# ----------------------------------------------------------------------------
def _conv3x3_kernel(x_ref, w_ref, o_ref, xh_ref):
    _, H, W, Cin = x_ref.shape
    th = o_ref.shape[1]
    Cout = o_ref.shape[3]
    M = th * W

    r = pl.program_id(1)
    nR = pl.num_programs(1)
    g0 = r * th                                   # first output row of this tile

    # ---- vertical halo: fold padding=1 along H into the kernel -------------
    xh_ref[pl.ds(1, th)] = x_ref[0, pl.ds(g0, th)]

    @pl.when(r > 0)
    def _():
        xh_ref[pl.ds(0, 1)] = x_ref[0, pl.ds(g0 - 1, 1)]

    @pl.when(r == 0)
    def _():
        xh_ref[pl.ds(0, 1)] = jnp.zeros((1, W, Cin), xh_ref.dtype)

    @pl.when(r < nR - 1)
    def _():
        xh_ref[pl.ds(th + 1, 1)] = x_ref[0, pl.ds(g0 + th, 1)]

    @pl.when(r == nR - 1)
    def _():
        xh_ref[pl.ds(th + 1, 1)] = jnp.zeros((1, W, Cin), xh_ref.dtype)

    xh = xh_ref[...]                              # (th+2, W, Cin)

    # ---- fuse the 3 dy taps along K (contraction depth 3*Cin) --------------
    # xcat[h*W + w, dy*Cin + c] = x[g0 + h + dy - 1, w, c]
    # The dy windows are tile-aligned major-axis slices (no strided copies).
    xcat = jnp.concatenate(
        [xh[dy:dy + th].reshape(M, Cin) for dy in range(3)], axis=-1)

    # flat-row column index (w coordinate) for the horizontal padding masks
    col = lax.broadcasted_iota(jnp.int32, (M, 1), 0) % W

    # dx = 1 (centre column): no shift; init accumulator from the matmul.
    acc = jnp.dot(xcat, w_ref[1], preferred_element_type=jnp.float32)

    # dx = 0 (left neighbour, w-1): shift flat rows down by one (row 0 is a
    # don't-care filler) and zero rows where w == 0 (left zero-padding).
    # (A single sublane relayout; pltpu.roll(xcat, 1, axis=0) is equivalent.)
    left = jnp.concatenate([xcat[:1], xcat[:M - 1]], axis=0)
    left = jnp.where(col == 0, jnp.zeros_like(left), left)
    acc = acc + jnp.dot(left, w_ref[0], preferred_element_type=jnp.float32)

    # dx = 2 (right neighbour, w+1): shift flat rows up by one (last row is a
    # don't-care filler) and zero rows where w == W-1 (right zero-padding).
    right = jnp.concatenate([xcat[1:], xcat[M - 1:]], axis=0)
    right = jnp.where(col == W - 1, jnp.zeros_like(right), right)
    acc = acc + jnp.dot(right, w_ref[2], preferred_element_type=jnp.float32)

    # TODO(synk): on v6e/v7x (256-deep MXU) optionally fuse dx too (single
    # matmul with K = 9*Cin); K = 3*Cin is the sweet spot for v5e.

    o_ref[0] = acc.reshape(th, W, Cout).astype(o_ref.dtype)


def _pick_row_tile(H, W, target_rows=128):
    """Largest divisor of H whose tile has at most `target_rows` matmul rows."""
    best = 1
    for d in range(1, H + 1):
        if H % d == 0 and d * W <= target_rows:
            best = d
    return best


# ----------------------------------------------------------------------------
# Wrapper: full Upsample forward (conv3x3 -> PixelShuffle(2)), NCHW in/out.
#   x_nchw : (B, n_feat, H, W)
#   w_oihw : (2*n_feat, n_feat, 3, 3)   torch Conv2d weight layout, no bias
# returns  (B, n_feat // 2, 2H, 2W)
# ----------------------------------------------------------------------------
def upsample_forward(x_nchw, w_oihw, *, compute_dtype=jnp.bfloat16,
                     out_dtype=None):
    B, Cin, H, W = x_nchw.shape
    Cout = w_oihw.shape[0]
    assert w_oihw.shape == (Cout, Cin, 3, 3)
    assert Cout % 4 == 0, "PixelShuffle(2) needs conv output channels % 4 == 0"
    out_dtype = x_nchw.dtype if out_dtype is None else out_dtype

    th = _pick_row_tile(H, W)
    nR = H // th

    # NCHW -> NHWC (channels on the lane axis); NO spatial pad (folded into the
    # kernel); bf16 operands for the MXU with f32 accumulation inside.
    x = jnp.transpose(x_nchw, (0, 2, 3, 1)).astype(compute_dtype)
    # torch OIHW -> (dx, dy, Cin, Cout) -> (3, 3*Cin, Cout): dy fused into K.
    w = jnp.transpose(w_oihw, (3, 2, 1, 0)).reshape(3, 3 * Cin, Cout)
    w = w.astype(compute_dtype)

    y = pl.pallas_call(
        _conv3x3_kernel,
        out_shape=jax.ShapeDtypeStruct((B, H, W, Cout), out_dtype),
        grid_spec=pltpu.PrefetchScalarGridSpec(
            num_scalar_prefetch=0,
            grid=(B, nR),
            in_specs=[
                # Full image per batch; constant block index across the row
                # axis keeps it VMEM-resident (one DMA per image).
                # TODO(synk): for very large H*W switch to a (th+2)-row halo
                # block fetched by manual DMA (memory_space=pl.ANY) instead.
                pl.BlockSpec((1, H, W, Cin), lambda b, r: (b, 0, 0, 0)),
                # Weights resident across the whole grid.  (pl.Buffered(1)
                # would drop the redundant second buffer; omitted for
                # portability — it is only ~288 KiB here.)
                pl.BlockSpec((3, 3 * Cin, Cout), lambda b, r: (0, 0, 0)),
            ],
            out_specs=pl.BlockSpec((1, th, W, Cout),
                                   lambda b, r: (b, r, 0, 0)),
            scratch_shapes=[pltpu.VMEM((th + 2, W, Cin), compute_dtype)],
        ),
        compiler_params=pltpu.CompilerParams(
            # Both axes are independent -> megacore / multi-TC sharding.
            dimension_semantics=("parallel", "parallel"),
            # Explicit, portable VMEM budget (fits v5e/v6e/v7x defaults with
            # large headroom; re-derive block sizes against this if halo-DMA
            # row tiles for big images are added).
            vmem_limit_bytes=32 * 1024 * 1024,
        ),
    )(x, w)

    # PixelShuffle(2) + NHWC->NCHW collapsed into one reshape/transpose/reshape
    # (single layout pass):  out[b, cp, 2h+i, 2w+j] = y[b, h, w, cp*4 + i*2 + j]
    Cps = Cout // 4
    y = y.reshape(B, H, W, Cps, 2, 2)
    y = jnp.transpose(y, (0, 3, 1, 4, 2, 5))      # (B, Cps, H, 2, W, 2)
    return y.reshape(B, Cps, 2 * H, 2 * W)


# ----------------------------------------------------------------------------
# Pure-JAX f32 reference of the same forward pass (torch semantics).
# ----------------------------------------------------------------------------
def upsample_ref(x_nchw, w_oihw):
    y = lax.conv_general_dilated(
        x_nchw, w_oihw,
        window_strides=(1, 1),
        padding=((1, 1), (1, 1)),
        dimension_numbers=("NCHW", "OIHW", "NCHW"),
        precision=lax.Precision.HIGHEST,
    )
    B, C, H, W = y.shape
    Cps = C // 4
    y = y.reshape(B, Cps, 2, 2, H, W)
    y = jnp.transpose(y, (0, 1, 4, 2, 5, 3))      # (B, Cps, H, i, W, j)
    return y.reshape(B, Cps, 2 * H, 2 * W)


# ----------------------------------------------------------------------------
# Main
# ----------------------------------------------------------------------------
if __name__ == "__main__":
    # Small but lane-friendly shapes: n_feat=64 -> conv Cout = 128 (lane-dense).
    B, n_feat, H, W = 2, 64, 16, 16

    key = jax.random.PRNGKey(0)
    kx, kw = jax.random.split(key)

    x = jax.random.normal(kx, (B, n_feat, H, W), dtype=jnp.float32)

    # Deterministic synthetic Conv2d weight in torch layout (OIHW), no bias,
    # kaiming-uniform-like scale.
    fan_in = n_feat * 9
    bound = 1.0 / jnp.sqrt(jnp.float32(fan_in))
    w = jax.random.uniform(kw, (2 * n_feat, n_feat, 3, 3), jnp.float32,
                           -bound, bound)

    y = upsample_forward(x, w)
    jax.block_until_ready(y)

    y_ref = upsample_ref(x, w)
    assert y.shape == (B, n_feat // 2, 2 * H, 2 * W), y.shape
    # bf16 MXU operands with f32 accumulation vs. the f32 reference.
    assert jnp.allclose(y, y_ref, atol=5e-2, rtol=5e-2), float(
        jnp.max(jnp.abs(y - y_ref)))

    print("KERNEL_OK")
</pallas_src>

<mosaic_0001>
module attributes {stable_mosaic.version = 11 : i64} {
  func.func @_conv3x3_kernel(%arg0: i32, %arg1: i32, %arg2: memref<1x16x16x64xbf16, #tpu.memory_space<vmem>>, %arg3: memref<3x192x128xbf16, #tpu.memory_space<vmem>>, %arg4: memref<1x8x16x128xf32, #tpu.memory_space<vmem>>, %arg5: memref<10x16x64xbf16, #tpu.memory_space<vmem>>) attributes {dimension_semantics = [#tpu.dimension_semantics<parallel>, #tpu.dimension_semantics<parallel>], iteration_bounds = array<i64: 2, 2>, scalar_prefetch = 0 : i64, scratch_operands = 1 : i64, tpu.core_type = #tpu.core_type<tc>, window_params = [{transform_indices = @transform_0, window_bounds = array<i64: 1, 16, 16, 64>}, {pipeline_mode = #tpu.pipeline_mode<synchronous>, transform_indices = @transform_1, window_bounds = array<i64: 3, 192, 128>}, {transform_indices = @transform_2, window_bounds = array<i64: 1, 8, 16, 128>}]} {
    %c8_i32 = arith.constant 8 : i32
    %0 = arith.muli %arg1, %c8_i32 : i32
    %c0 = arith.constant 0 : index
    %1 = arith.index_cast %0 : i32 to index
    %c0_0 = arith.constant 0 : index
    %c0_1 = arith.constant 0 : index
    %2 = vector.load %arg2[%c0, %1, %c0_0, %c0_1] : memref<1x16x16x64xbf16, #tpu.memory_space<vmem>>, vector<1x8x16x64xbf16>
    %3 = vector.shape_cast %2 : vector<1x8x16x64xbf16> to vector<8x16x64xbf16>
    %c1 = arith.constant 1 : index
    %c0_2 = arith.constant 0 : index
    %c0_3 = arith.constant 0 : index
    %4 = vector.load %arg5[%c1, %c0_2, %c0_3] : memref<10x16x64xbf16, #tpu.memory_space<vmem>>, vector<8x16x64xbf16>
    tpu.vector_store %arg5[%c1, %c0_2, %c0_3], %3 {strides = array<i32>} : memref<10x16x64xbf16, #tpu.memory_space<vmem>>, vector<8x16x64xbf16>,
    %c0_i32 = arith.constant 0 : i32
    %5 = arith.cmpi sgt, %arg1, %c0_i32 : i32
    %6 = arith.extui %5 : i1 to i32
    %c0_i32_4 = arith.constant 0 : i32
    %7 = arith.cmpi ne, %6, %c0_i32_4 : i32
    scf.if %7 {
      %c1_i32_35 = arith.constant 1 : i32
      %75 = arith.subi %0, %c1_i32_35 : i32
      %c0_36 = arith.constant 0 : index
      %76 = arith.index_cast %75 : i32 to index
      %c0_37 = arith.constant 0 : index
      %c0_38 = arith.constant 0 : index
      %77 = vector.load %arg2[%c0_36, %76, %c0_37, %c0_38] : memref<1x16x16x64xbf16, #tpu.memory_space<vmem>>, vector<1x1x16x64xbf16>
      %78 = vector.shape_cast %77 : vector<1x1x16x64xbf16> to vector<1x16x64xbf16>
      %c0_39 = arith.constant 0 : index
      %c0_40 = arith.constant 0 : index
      %c0_41 = arith.constant 0 : index
      %79 = vector.load %arg5[%c0_39, %c0_40, %c0_41] : memref<10x16x64xbf16, #tpu.memory_space<vmem>>, vector<1x16x64xbf16>
      tpu.vector_store %arg5[%c0_39, %c0_40, %c0_41], %78 {strides = array<i32>} : memref<10x16x64xbf16, #tpu.memory_space<vmem>>, vector<1x16x64xbf16>,
    } else {
    }
    %c0_i32_5 = arith.constant 0 : i32
    %8 = arith.cmpi eq, %arg1, %c0_i32_5 : i32
    %9 = arith.extui %8 : i1 to i32
    %c0_i32_6 = arith.constant 0 : i32
    %10 = arith.cmpi ne, %9, %c0_i32_6 : i32
    scf.if %10 {
      %cst_35 = arith.constant 0.000000e+00 : bf16
      %75 = vector.broadcast %cst_35 : bf16 to vector<1x16x64xbf16>
      %c0_36 = arith.constant 0 : index
      %c0_37 = arith.constant 0 : index
      %c0_38 = arith.constant 0 : index
      %76 = vector.load %arg5[%c0_36, %c0_37, %c0_38] : memref<10x16x64xbf16, #tpu.memory_space<vmem>>, vector<1x16x64xbf16>
      tpu.vector_store %arg5[%c0_36, %c0_37, %c0_38], %75 {strides = array<i32>} : memref<10x16x64xbf16, #tpu.memory_space<vmem>>, vector<1x16x64xbf16>,
    } else {
    }
    %c1_i32 = arith.constant 1 : i32
    %11 = arith.cmpi slt, %arg1, %c1_i32 : i32
    %12 = arith.extui %11 : i1 to i32
    %c0_i32_7 = arith.constant 0 : i32
    %13 = arith.cmpi ne, %12, %c0_i32_7 : i32
    scf.if %13 {
      %c8_i32_35 = arith.constant 8 : i32
      %75 = arith.addi %0, %c8_i32_35 : i32
      %c0_36 = arith.constant 0 : index
      %76 = arith.index_cast %75 : i32 to index
      %c0_37 = arith.constant 0 : index
      %c0_38 = arith.constant 0 : index
      %77 = vector.load %arg2[%c0_36, %76, %c0_37, %c0_38] : memref<1x16x16x64xbf16, #tpu.memory_space<vmem>>, vector<1x1x16x64xbf16>
      %78 = vector.shape_cast %77 : vector<1x1x16x64xbf16> to vector<1x16x64xbf16>
      %c9 = arith.constant 9 : index
      %c0_39 = arith.constant 0 : index
      %c0_40 = arith.constant 0 : index
      %79 = vector.load %arg5[%c9, %c0_39, %c0_40] : memref<10x16x64xbf16, #tpu.memory_space<vmem>>, vector<1x16x64xbf16>
      tpu.vector_store %arg5[%c9, %c0_39, %c0_40], %78 {strides = array<i32>} : memref<10x16x64xbf16, #tpu.memory_space<vmem>>, vector<1x16x64xbf16>,
    } else {
    }
    %c1_i32_8 = arith.constant 1 : i32
    %14 = arith.cmpi eq, %arg1, %c1_i32_8 : i32
    %15 = arith.extui %14 : i1 to i32
    %c0_i32_9 = arith.constant 0 : i32
    %16 = arith.cmpi ne, %15, %c0_i32_9 : i32
    scf.if %16 {
      %cst_35 = arith.constant 0.000000e+00 : bf16
      %75 = vector.broadcast %cst_35 : bf16 to vector<1x16x64xbf16>
      %c9 = arith.constant 9 : index
      %c0_36 = arith.constant 0 : index
      %c0_37 = arith.constant 0 : index
      %76 = vector.load %arg5[%c9, %c0_36, %c0_37] : memref<10x16x64xbf16, #tpu.memory_space<vmem>>, vector<1x16x64xbf16>
      tpu.vector_store %arg5[%c9, %c0_36, %c0_37], %75 {strides = array<i32>} : memref<10x16x64xbf16, #tpu.memory_space<vmem>>, vector<1x16x64xbf16>,
    } else {
    }
    %c0_10 = arith.constant 0 : index
    %c0_11 = arith.constant 0 : index
    %c0_12 = arith.constant 0 : index
    %17 = vector.load %arg5[%c0_10, %c0_11, %c0_12] : memref<10x16x64xbf16, #tpu.memory_space<vmem>>, vector<10x16x64xbf16>
    %18 = vector.extract_strided_slice %17 {offsets = [0, 0, 0], sizes = [8, 16, 64], strides = [1, 1, 1]} : vector<10x16x64xbf16> to vector<8x16x64xbf16>
    %19 = vector.shape_cast %18 : vector<8x16x64xbf16> to vector<128x64xbf16>
    %20 = vector.extract_strided_slice %17 {offsets = [1, 0, 0], sizes = [8, 16, 64], strides = [1, 1, 1]} : vector<10x16x64xbf16> to vector<8x16x64xbf16>
    %21 = vector.shape_cast %20 : vector<8x16x64xbf16> to vector<128x64xbf16>
    %22 = vector.extract_strided_slice %17 {offsets = [2, 0, 0], sizes = [8, 16, 64], strides = [1, 1, 1]} : vector<10x16x64xbf16> to vector<8x16x64xbf16>
    %23 = vector.shape_cast %22 : vector<8x16x64xbf16> to vector<128x64xbf16>
    %24 = tpu.concatenate %19, %21, %23 in 1 : vector<128x64xbf16>, vector<128x64xbf16>, vector<128x64xbf16> -> vector<128x192xbf16>
    %25 = tpu.iota {dimensions = array<i32: 0>} : vector<128x1xi32>
    %c16_i32 = arith.constant 16 : i32
    %c0_i32_13 = arith.constant 0 : i32
    %26 = arith.cmpi eq, %c16_i32, %c0_i32_13 : i32
    %c1_i32_14 = arith.constant 1 : i32
    %27 = arith.select %26, %c1_i32_14, %c16_i32 : i32
    %28 = vector.broadcast %27 : i32 to vector<128x1xi32>
    %29 = arith.remsi %25, %28 : vector<128x1xi32>
    %c0_i32_15 = arith.constant 0 : i32
    %30 = vector.broadcast %c0_i32_15 : i32 to vector<128x1xi32>
    %31 = arith.cmpi ne, %29, %30 : vector<128x1xi32>
    %c0_i32_16 = arith.constant 0 : i32
    %32 = vector.broadcast %c0_i32_16 : i32 to vector<128x1xi32>
    %33 = arith.cmpi slt, %29, %32 : vector<128x1xi32>
    %c0_i32_17 = arith.constant 0 : i32
    %34 = arith.cmpi slt, %27, %c0_i32_17 : i32
    %35 = vector.broadcast %34 : i1 to vector<128x1xi1>
    %36 = vector.broadcast %35 : vector<128x1xi1> to vector<128x1xi1>
    %37 = arith.xori %33, %36 : vector<128x1xi1>
    %38 = arith.andi %37, %31 : vector<128x1xi1>
    %39 = vector.broadcast %27 : i32 to vector<128x1xi32>
    %40 = arith.addi %29, %39 : vector<128x1xi32>
    %41 = arith.select %38, %40, %29 : vector<128x1xi1>, vector<128x1xi32>
    %c1_18 = arith.constant 1 : index
    %c0_19 = arith.constant 0 : index
    %c0_20 = arith.constant 0 : index
    %42 = vector.load %arg3[%c1_18, %c0_19, %c0_20] : memref<3x192x128xbf16, #tpu.memory_space<vmem>>, vector<1x192x128xbf16>
    %43 = vector.shape_cast %42 : vector<1x192x128xbf16> to vector<192x128xbf16>
    %cst = arith.constant dense<0.000000e+00> : vector<128x128xf32>
    %44 = tpu.matmul %24, %43, %cst {dimension_numbers = #tpu.dot_dimension_numbers<[1], [0], [0], [1], [0, 0, 1, 1], [], []>} : vector<128x192xbf16>, vector<192x128xbf16>, vector<128x128xf32> -> vector<128x128xf32>
    %45 = vector.extract_strided_slice %24 {offsets = [0, 0], sizes = [1, 192], strides = [1, 1]} : vector<128x192xbf16> to vector<1x192xbf16>
    %46 = vector.extract_strided_slice %24 {offsets = [0, 0], sizes = [127, 192], strides = [1, 1]} : vector<128x192xbf16> to vector<127x192xbf16>
    %47 = tpu.concatenate %45, %46 in 0 : vector<1x192xbf16>, vector<127x192xbf16> -> vector<128x192xbf16>
    %c0_i32_21 = arith.constant 0 : i32
    %48 = vector.broadcast %c0_i32_21 : i32 to vector<128x1xi32>
    %49 = arith.cmpi eq, %41, %48 : vector<128x1xi32>
    %cst_22 = arith.constant 0.000000e+00 : bf16
    %50 = vector.broadcast %cst_22 : bf16 to vector<128x192xbf16>
    %51 = vector.shape_cast %49 : vector<128x1xi1> to vector<128x1xi1>
    %52 = vector.broadcast %51 : vector<128x1xi1> to vector<128x192xi1>
    %53 = arith.select %52, %50, %47 : vector<128x192xi1>, vector<128x192xbf16>
    %c0_23 = arith.constant 0 : index
    %c0_24 = arith.constant 0 : index
    %c0_25 = arith.constant 0 : index
    %54 = vector.load %arg3[%c0_23, %c0_24, %c0_25] : memref<3x192x128xbf16, #tpu.memory_space<vmem>>, vector<1x192x128xbf16>
    %55 = vector.shape_cast %54 : vector<1x192x128xbf16> to vector<192x128xbf16>
    %cst_26 = arith.constant dense<0.000000e+00> : vector<128x128xf32>
    %56 = tpu.matmul %53, %55, %cst_26 {dimension_numbers = #tpu.dot_dimension_numbers<[1], [0], [0], [1], [0, 0, 1, 1], [], []>} : vector<128x192xbf16>, vector<192x128xbf16>, vector<128x128xf32> -> vector<128x128xf32>
    %57 = arith.addf %44, %56 : vector<128x128xf32>
    %58 = vector.extract_strided_slice %24 {offsets = [1, 0], sizes = [127, 192], strides = [1, 1]} : vector<128x192xbf16> to vector<127x192xbf16>
    %59 = vector.extract_strided_slice %24 {offsets = [127, 0], sizes = [1, 192], strides = [1, 1]} : vector<128x192xbf16> to vector<1x192xbf16>
    %60 = tpu.concatenate %58, %59 in 0 : vector<127x192xbf16>, vector<1x192xbf16> -> vector<128x192xbf16>
    %c15_i32 = arith.constant 15 : i32
    %61 = vector.broadcast %c15_i32 : i32 to vector<128x1xi32>
    %62 = arith.cmpi eq, %41, %61 : vector<128x1xi32>
    %cst_27 = arith.constant 0.000000e+00 : bf16
    %63 = vector.broadcast %cst_27 : bf16 to vector<128x192xbf16>
    %64 = vector.shape_cast %62 : vector<128x1xi1> to vector<128x1xi1>
    %65 = vector.broadcast %64 : vector<128x1xi1> to vector<128x192xi1>
    %66 = arith.select %65, %63, %60 : vector<128x192xi1>, vector<128x192xbf16>
    %c2 = arith.constant 2 : index
    %c0_28 = arith.constant 0 : index
    %c0_29 = arith.constant 0 : index
    %67 = vector.load %arg3[%c2, %c0_28, %c0_29] : memref<3x192x128xbf16, #tpu.memory_space<vmem>>, vector<1x192x128xbf16>
    %68 = vector.shape_cast %67 : vector<1x192x128xbf16> to vector<192x128xbf16>
    %cst_30 = arith.constant dense<0.000000e+00> : vector<128x128xf32>
    %69 = tpu.matmul %66, %68, %cst_30 {dimension_numbers = #tpu.dot_dimension_numbers<[1], [0], [0], [1], [0, 0, 1, 1], [], []>} : vector<128x192xbf16>, vector<192x128xbf16>, vector<128x128xf32> -> vector<128x128xf32>
    %70 = arith.addf %57, %69 : vector<128x128xf32>
    %71 = vector.shape_cast %70 : vector<128x128xf32> to vector<8x16x128xf32>
    %c0_31 = arith.constant 0 : index
    %c0_32 = arith.constant 0 : index
    %c0_33 = arith.constant 0 : index
    %c0_34 = arith.constant 0 : index
    %72 = vector.load %arg4[%c0_31, %c0_32, %c0_33, %c0_34] : memref<1x8x16x128xf32, #tpu.memory_space<vmem>>, vector<1x8x16x128xf32>
    %73 = vector.shape_cast %72 : vector<1x8x16x128xf32> to vector<8x16x128xf32>
    %74 = vector.shape_cast %71 : vector<8x16x128xf32> to vector<1x8x16x128xf32>
    tpu.vector_store %arg4[%c0_31, %c0_32, %c0_33, %c0_34], %74 {strides = array<i32>} : memref<1x8x16x128xf32, #tpu.memory_space<vmem>>, vector<1x8x16x128xf32>,
    return
  }
  func.func @transform_0(%arg0: i32, %arg1: i32) -> (i32, i32, i32, i32) {
    %c0_i32 = arith.constant 0 : i32
    %c0_i32_0 = arith.constant 0 : i32
    %c0_i32_1 = arith.constant 0 : i32
    %c0_i32_2 = arith.constant 0 : i32
    return %arg0, %c0_i32, %c0_i32_0, %c0_i32_1 : i32, i32, i32, i32
  }
  func.func @transform_1(%arg0: i32, %arg1: i32) -> (i32, i32, i32) {
    %c0_i32 = arith.constant 0 : i32
    %c0_i32_0 = arith.constant 0 : i32
    %c0_i32_1 = arith.constant 0 : i32
    %c0_i32_2 = arith.constant 0 : i32
    return %c0_i32, %c0_i32_0, %c0_i32_1 : i32, i32, i32
  }
  func.func @transform_2(%arg0: i32, %arg1: i32) -> (i32, i32, i32, i32) {
    %c0_i32 = arith.constant 0 : i32
    %c0_i32_0 = arith.constant 0 : i32
    %c0_i32_1 = arith.constant 0 : i32
    return %arg0, %arg1, %c0_i32, %c0_i32_0 : i32, i32, i32, i32
  }
}

</mosaic_0001>

<llo_original>
// kernel: tpu_custom_call.1
$region0: #{tpu_custom_call.1}
  #allocation0 [shape = 'u32[]', space=smem, size = 0x4, offset = 0x4, fixed_abs, tag = 'smem constant byte address 0x4 - core index']
  #allocation1 [shape = 'u32[144,128]{1,0:T(1,128)}', space=vmem, size = 0x12000, scoped, tag = 'internal scratch']
  #allocation2 [shape = 'bf16[10,16,64]{2,1,0:T(16,128)(2,1)}', space=vmem, size = 0xa000, scoped, tag = 'scratch operand']
  %s0 = inlined_call_operand.hbm [shape: bf16[2,16,16,64], index: 0, kind: input, shape index: {}]
  %s1 = inlined_call_operand.hbm [shape: bf16[3,192,128], index: 1, kind: input, shape index: {}]
  %s2 = inlined_call_operand.hbm [shape: f32[2,16,16,128], index: 2, kind: output, shape index: {}]
  %s3 = sld [smem:[#allocation0]]
  $region65: #{tpu_custom_call.1} parent=0
    _
  %s5 = ssub.s32 1, %s3
  %s6 = scalar_select 0, %s5, %s3
  $region1: #{tpu_custom_call.1} parent=0
    #allocation3 [shape = 'u8[131072]{0}', space=vmem, size = 0x20000, scoped, tag = 'input window, operand 0']
    #allocation4 [shape = 's32[2]{0}', space=sflag, size = 0x8, scoped, tag = 'scoped memory for tpu_custom_call.1']
    #allocation5 [shape = 's32[2]{0}', space=sflag, size = 0x8, scoped, tag = 'scoped memory for tpu_custom_call.1']
    #allocation6 [shape = 'u8[147456]{0}', space=vmem, size = 0x24000, scoped, tag = 'input window, operand 1, single buffered']
    #allocation7 [shape = 's32[1]{0}', space=sflag, size = 0x4, scoped, tag = 'scoped memory for tpu_custom_call.1']
    #allocation8 [shape = 'u8[131072]{0}', space=vmem, size = 0x20000, scoped, tag = 'output window, operand 0']
    %7 = vsyncpa [#allocation4], 0
    %s8 = scalar_lea.sflag [#allocation4], 1
    %9 = vsyncpa %s8, 0
    %10 = vsyncpa [#allocation7], 0
    %11 = vsyncpa [#allocation5], 0
    %s12 = scalar_lea.sflag [#allocation5], 1
    %13 = vsyncpa %s12, 0
    loop: start=0, step=1, limit=6
    $region2: #{tpu_custom_call.1} parent=1 // loop_pre_header
      _
    $region3: #{tpu_custom_call.1} parent=1 // loop_header
      %s15 = sphi 0, %s19
      %p16 = scmp.ge.s32.totalorder %s15, 6
      %s22 = sphi 0, %s34
      %s23 = sphi 0, %s30
      %s24 = sphi 0, %s22
      %s25 = sphi 0, %s23
      %s26 = sphi 0, %s24
      %s27 = sphi 0, %s25
      %s37 = sphi 0, %s39
      %s40 = sphi 0, %s37
      %s41 = sphi 0, %s40
      %s57 = sphi 0, %s41
      %s61 = sphi 0, %s61
      %s63 = sphi 0, %s61
      %s64 = sphi 0, %s63
      %s78 = sphi 0, %s64
      %s86 = sphi 0, %s88
      %s89 = sphi 0, %s86
      %s90 = sphi 0, %s89
      %s106 = sphi 0, %s90
    $region4: #{tpu_custom_call.1} parent=1 // loop_header_branch
      %18 = sbr.rel (%p16) target = $region8
    $region5: #{tpu_custom_call.1} parent=1 // loop_body
      %s20 = ssub.s32 %s15, 1
      %s21 = ssub.s32 %s15, 2
      %s28 = sadd.s32 1, %s23
      %p29 = scmp.ge.s32.totalorder %s28, 2
      %s30 = scalar_select %p29, 0, %s28
      %s31 = sadd.s32 1, %s22
      %s32 = scalar_select %p29, %s31, %s22
      %p33 = scmp.ge.s32.totalorder %s32, 2
      %s34 = scalar_select %p33, 0, %s32
      %s35 = ssub.s32 %s22, %s34
      %p36 = scmp.eq.s32.totalorder %s35, 0
      %s38 = sadd.s32 %s37, 1
      %s39 = scalar_select %p36, %s37, %s38
      %p42 = pneg %p36
      %p43 = scmp.eq.s32.totalorder %s15, 3
      %p44 = por %p42, %p43
      %p45 = scmp.ne.s32.totalorder %s37, %s40
      %p46 = scmp.eq.s32.totalorder %s15, 0
      %p47 = por %p45, %p46
      %p48 = scmp.ne.s32.totalorder %s37, %s40
      %p49 = scmp.eq.s32.totalorder %s20, 3
      %p50 = por %p48, %p49
      %p51 = scmp.ne.s32.totalorder %s40, %s41
      %p52 = scmp.eq.s32.totalorder %s20, 0
      %p53 = por %p51, %p52
      %p54 = scmp.ne.s32.totalorder %s40, %s41
      %p55 = scmp.eq.s32.totalorder %s21, 3
      %p56 = por %p54, %p55
      %p58 = scmp.ne.s32.totalorder %s41, %s57
      %p59 = scmp.eq.s32.totalorder %s21, 0
      %p60 = por %p58, %p59
      %s62 = sadd.s32 %s61, 1
      %p65 = scmp.eq.s32.totalorder %s15, 3
      %p66 = scmp.ne.s32.totalorder %s61, %s63
      %p67 = scmp.eq.s32.totalorder %s15, 0
      %p68 = por %p66, %p67
      %p69 = scmp.ne.s32.totalorder %s61, %s63
      %p70 = scmp.eq.s32.totalorder %s20, 3
      %p71 = por %p69, %p70
      %p72 = scmp.ne.s32.totalorder %s63, %s64
      %p73 = scmp.eq.s32.totalorder %s20, 0
      %p74 = por %p72, %p73
      %p75 = scmp.ne.s32.totalorder %s63, %s64
      %p76 = scmp.eq.s32.totalorder %s21, 3
      %p77 = por %p75, %p76
      %p79 = scmp.ne.s32.totalorder %s64, %s78
      %p80 = scmp.eq.s32.totalorder %s21, 0
      %p81 = por %p79, %p80
      %s82 = ssub.s32 %s22, %s34
      %s83 = ssub.s32 %s23, %s30
      %s84 = sor.u32 %s82, %s83
      %p85 = scmp.eq.s32.totalorder %s84, 0
      %s87 = sadd.s32 %s86, 1
      %s88 = scalar_select %p85, %s86, %s87
      %p91 = pneg %p85
      %p92 = scmp.eq.s32.totalorder %s15, 3
      %p93 = por %p91, %p92
      %p94 = scmp.ne.s32.totalorder %s86, %s89
      %p95 = scmp.eq.s32.totalorder %s15, 0
      %p96 = por %p94, %p95
      %p97 = scmp.ne.s32.totalorder %s86, %s89
      %p98 = scmp.eq.s32.totalorder %s20, 3
      %p99 = por %p97, %p98
      %p100 = scmp.ne.s32.totalorder %s89, %s90
      %p101 = scmp.eq.s32.totalorder %s20, 0
      %p102 = por %p100, %p101
      %p103 = scmp.ne.s32.totalorder %s89, %s90
      %p104 = scmp.eq.s32.totalorder %s21, 3
      %p105 = por %p103, %p104
      %p107 = scmp.ne.s32.totalorder %s90, %s106
      %p108 = scmp.eq.s32.totalorder %s21, 0
      %p109 = por %p107, %p108
      %p110 = scmp.le.s32.totalorder 1, %s15
      %p111 = scmp.lt.s32.totalorder %s15, 5
      %p112 = pnand %p110, %p111
      %p113 = pneg %p112
      // Predicated region
      $region9: #{tpu_custom_call.1} parent=5 // pred_check
        _
      $region10: #{tpu_custom_call.1} parent=5 // pred_check_branch
        %115 = sbr.rel (%p112) target = $region12
      $region11: #{tpu_custom_call.1} parent=5 // pred_region
        %s116 = ssub.s32 %s15, 1
        // Predicated region
        $region13: #{tpu_custom_call.1} parent=11 // pred_check
          %p117 = pneg %p74
        $region14: #{tpu_custom_call.1} parent=11 // pred_check_branch
          %119 = sbr.rel (%p117) target = $region16
        $region15: #{tpu_custom_call.1} parent=11 // pred_region
          %s121 = ssub.s32 4608, 4608
          %122 = vsyncadd [#allocation7], %s121
          %s123 = sshll.u32 [#allocation6], 4
          %s124 = int_to_ptr.vmem [resolvable:$true] %s123
          %129 = dma.hbm_to_vmem [thread:$0]  %s1, 4608, %s124, [#allocation7], 64, 64, 4
        $region16: #{tpu_custom_call.1} parent=11 // pred_fallthru
          _
      $region12: #{tpu_custom_call.1} parent=5 // pred_fallthru
        _
      %p130 = scmp.lt.s32.totalorder %s15, 4
      // Predicated region
      $region17: #{tpu_custom_call.1} parent=5 // pred_check
        %p131 = pneg %p130
      $region18: #{tpu_custom_call.1} parent=5 // pred_check_branch
        %133 = sbr.rel (%p131) target = $region20
      $region19: #{tpu_custom_call.1} parent=5 // pred_region
        // Predicated region
        $region21: #{tpu_custom_call.1} parent=19 // pred_check
          %p134 = pneg %p47
        $region22: #{tpu_custom_call.1} parent=19 // pred_check_branch
          %136 = sbr.rel (%p134) target = $region24
        $region23: #{tpu_custom_call.1} parent=19 // pred_region
          %s137 = sand.u32 %s37, 1
          %s138 = scalar_lea.sflag [#allocation4], %s137
          %s139 = sand.u32 %s37, 1
          %s140 = smul.addr %s139, 128
          %s141 = scalar_lea.vmem [#allocation3], %s140
          %s143 = ssub.s32 2048, 2048
          %144 = vsyncadd %s138, %s143
          %s145 = smul.addr %s22, 32
          %s146 = smul.addr %s145, 64
          %s147 = scalar_lea.hbm %s0, %s146
          %s148 = sshll.u32 %s141, 4
          %s149 = int_to_ptr.vmem [resolvable:$true] %s148
          %154 = dma.hbm_to_vmem [thread:$0]  %s147, 2048, %s149, %s138, 64, 64, 4
        $region24: #{tpu_custom_call.1} parent=19 // pred_fallthru
          _
      $region20: #{tpu_custom_call.1} parent=5 // pred_fallthru
        _
      %p155 = scmp.le.s32.totalorder 1, %s15
      %p156 = scmp.lt.s32.totalorder %s15, 5
      %p157 = pnand %p155, %p156
      %p158 = pneg %p157
      // Predicated region
      $region25: #{tpu_custom_call.1} parent=5 // pred_check
        _
      $region26: #{tpu_custom_call.1} parent=5 // pred_check_branch
        %160 = sbr.rel (%p157) target = $region28
      $region27: #{tpu_custom_call.1} parent=5 // pred_region
        %s161 = ssub.s32 %s15, 1
        %s162 = sand.u32 %s40, 1
        %s163 = scalar_lea.sflag [#allocation4], %s162
        %s164 = sand.u32 %s40, 1
        %s165 = smul.addr %s164, 128
        %s166 = scalar_lea.vmem [#allocation3], %s165
        // Predicated region
        $region29: #{tpu_custom_call.1} parent=27 // pred_check
          %p167 = pneg %p53
        $region30: #{tpu_custom_call.1} parent=27 // pred_check_branch
          %169 = sbr.rel (%p167) target = $region32
        $region31: #{tpu_custom_call.1} parent=27 // pred_region
          %170 = dma.done %s163, 2048
        $region32: #{tpu_custom_call.1} parent=27 // pred_fallthru
          _
        // Predicated region
        $region33: #{tpu_custom_call.1} parent=27 // pred_check
          %p171 = pneg %p74
        $region34: #{tpu_custom_call.1} parent=27 // pred_check_branch
          %173 = sbr.rel (%p171) target = $region36
        $region35: #{tpu_custom_call.1} parent=27 // pred_region
          %174 = dma.done [#allocation7], 4608
        $region36: #{tpu_custom_call.1} parent=27 // pred_fallthru
          _
        %s175 = sand.u32 %s40, 1
        %s176 = scalar_lea.sflag [#allocation4], %s175
        %s177 = sand.u32 %s40, 1
        %s178 = smul.addr %s177, 128
        %s179 = scalar_lea.vmem [#allocation3], %s178
        %p180 = pneg %p53
        %p181 = pneg %p50
        %p182 = pneg %p74
        %p183 = pneg %p71
        %p184 = pneg %p102
        %p185 = pneg %p99
        %s186 = sand.u32 %s89, 1
        %s187 = scalar_lea.sflag [#allocation5], %s186
        %s188 = sand.u32 %s89, 1
        %s189 = smul.addr %s188, 128
        %s190 = scalar_lea.vmem [#allocation8], %s189
        %s191 = smul.u32 8, %s25
        %s195 = smul.u32 %s25, 8
        %s196 = smul.u32 %s195, 2
        %s197 = smul.addr %s196, 4
        %s198 = scalar_lea.vmem %s166, %s197 [#allocation3]
        %v199 = vld [vmem:[%s198] sm:$0xf]
        %v200 = vld [vmem:[%s198 + $0x4] sm:$0xf]
        %v201 = vld [vmem:[%s198 + $0x8] sm:$0xf]
        %v202 = vld [vmem:[%s198 + $0xc] sm:$0xf]
        %v203 = vld [vmem:[%s198 + $0x10] sm:$0xf]
        %v204 = vld [vmem:[%s198 + $0x14] sm:$0xf]
        %v205 = vld [vmem:[%s198 + $0x18] sm:$0xf]
        %v206 = vld [vmem:[%s198 + $0x1c] sm:$0xf]
        %v207 = vld [vmem:[%s198 + $0x20] sm:$0xf]
        %v208 = vld [vmem:[%s198 + $0x24] sm:$0xf]
        %v209 = vld [vmem:[%s198 + $0x28] sm:$0xf]
        %v210 = vld [vmem:[%s198 + $0x2c] sm:$0xf]
        %v211 = vld [vmem:[%s198 + $0x30] sm:$0xf]
        %v212 = vld [vmem:[%s198 + $0x34] sm:$0xf]
        %v213 = vld [vmem:[%s198 + $0x38] sm:$0xf]
        %v214 = vld [vmem:[%s198 + $0x3c] sm:$0xf]
        %v231 = vunpack.c.l.b16 %v199
        %v232 = vunpack.c.l.b16 %v200
        %v233 = vunpack.c.l.b16 %v201
        %v234 = vunpack.c.l.b16 %v202
        %v235 = vunpack.c.l.b16 %v203
        %v236 = vunpack.c.l.b16 %v204
        %v237 = vunpack.c.l.b16 %v205
        %v238 = vunpack.c.l.b16 %v206
        %v239 = vunpack.c.l.b16 %v207
        %v240 = vunpack.c.l.b16 %v208
        %v241 = vunpack.c.l.b16 %v209
        %v242 = vunpack.c.l.b16 %v210
        %v243 = vunpack.c.l.b16 %v211
        %v244 = vunpack.c.l.b16 %v212
        %v245 = vunpack.c.l.b16 %v213
        %v246 = vunpack.c.l.b16 %v214
        %v247 = vpack.c.b16 %v232, %v231
        %v248 = vpack.c.b16 %v234, %v233
        %v249 = vpack.c.b16 %v236, %v235
        %v250 = vpack.c.b16 %v238, %v237
        %v251 = vpack.c.b16 %v240, %v239
        %v252 = vpack.c.b16 %v242, %v241
        %v253 = vpack.c.b16 %v244, %v243
        %v254 = vpack.c.b16 %v246, %v245
        %s263 = scalar_lea.vmem [#allocation2], 8
        %vm264 = vcmask 523264
        %265 = vst.msk [vmem:[%s263] sm:$0xff] %vm264, %v247
        %266 = vst.msk [vmem:[%s263 + $0x8] sm:$0xff] %vm264, %v248
        %267 = vst.msk [vmem:[%s263 + $0x10] sm:$0xff] %vm264, %v249
        %268 = vst.msk [vmem:[%s263 + $0x18] sm:$0xff] %vm264, %v250
        %269 = vst.msk [vmem:[%s263 + $0x20] sm:$0xff] %vm264, %v251
        %270 = vst.msk [vmem:[%s263 + $0x28] sm:$0xff] %vm264, %v252
        %271 = vst.msk [vmem:[%s263 + $0x30] sm:$0xff] %vm264, %v253
        %272 = vst.msk [vmem:[%s263 + $0x38] sm:$0xff] %vm264, %v254
        %p273 = scmp.gt.s32.totalorder %s25, 0
        // Predicated region
        $region37: #{tpu_custom_call.1} parent=27 // pred_check
          %p274 = pneg %p273
        $region38: #{tpu_custom_call.1} parent=27 // pred_check_branch
          %276 = sbr.rel (%p274) target = $region40
        $region39: #{tpu_custom_call.1} parent=27 // pred_region
          %s277 = ssub.s32 %s195, 1
          %s278 = smul.u32 %s277, 2
          %s279 = smul.addr %s278, 4
          %s280 = scalar_lea.vmem %s166, %s279 [#allocation3]
          %v281 = vld [vmem:[%s280] sm:$0xf]
          %v282 = vld [vmem:[%s280 + $0x4] sm:$0xf]
          %v285 = vunpack.c.l.b16 %v281
          %v286 = vunpack.c.l.b16 %v282
          %v287 = vpack.c.b16 %v286, %v285
          %289 = vst.msk [vmem:[#allocation2] sm:$0xff] %vm264, %v287
        $region40: #{tpu_custom_call.1} parent=27 // pred_fallthru
          _
        %p290 = scmp.eq.s32.totalorder %s25, 0
        // Predicated region
        $region41: #{tpu_custom_call.1} parent=27 // pred_check
          %p291 = pneg %p290
        $region42: #{tpu_custom_call.1} parent=27 // pred_check_branch
          %293 = sbr.rel (%p291) target = $region44
        $region43: #{tpu_custom_call.1} parent=27 // pred_region
          %294 = vst.msk [vmem:[#allocation2] sm:$0xff] %vm264, 0
        $region44: #{tpu_custom_call.1} parent=27 // pred_fallthru
          _
        %p295 = scmp.lt.s32.totalorder %s25, 1
        // Predicated region
        $region45: #{tpu_custom_call.1} parent=27 // pred_check
          %p296 = pneg %p295
        $region46: #{tpu_custom_call.1} parent=27 // pred_check_branch
          %298 = sbr.rel (%p296) target = $region48
        $region47: #{tpu_custom_call.1} parent=27 // pred_region
          %s299 = sadd.s32 %s195, 8
          %s300 = smul.u32 %s299, 2
          %s301 = smul.addr %s300, 4
          %s302 = scalar_lea.vmem %s166, %s301 [#allocation3]
          %v303 = vld [vmem:[%s302] sm:$0xf]
          %v304 = vld [vmem:[%s302 + $0x4] sm:$0xf]
          %v307 = vunpack.c.l.b16 %v303
          %v308 = vunpack.c.l.b16 %v304
          %v309 = vpack.c.b16 %v308, %v307
          %s311 = scalar_lea.vmem [#allocation2], 72
          %312 = vst.msk [vmem:[%s311] sm:$0xff] %vm264, %v309
        $region48: #{tpu_custom_call.1} parent=27 // pred_fallthru
          _
        %p313 = scmp.eq.s32.totalorder %s25, 1
        // Predicated region
        $region49: #{tpu_custom_call.1} parent=27 // pred_check
          %p314 = pneg %p313
        $region50: #{tpu_custom_call.1} parent=27 // pred_check_branch
          %316 = sbr.rel (%p314) target = $region52
        $region51: #{tpu_custom_call.1} parent=27 // pred_region
          %s317 = scalar_lea.vmem [#allocation2], 72
          %318 = vst.msk [vmem:[%s317] sm:$0xff] %vm264, 0
        $region52: #{tpu_custom_call.1} parent=27 // pred_fallthru
          _
        %v319 = vld [vmem:[#allocation2] sm:$0xff]
        %v320 = vld [vmem:[#allocation2 + $0x8] sm:$0xff]
        %v321 = vld [vmem:[#allocation2 + $0x10] sm:$0xff]
        %v322 = vld [vmem:[#allocation2 + $0x18] sm:$0xff]
        %v323 = vld [vmem:[#allocation2 + $0x20] sm:$0xff]
        %v324 = vld [vmem:[#allocation2 + $0x28] sm:$0xff]
        %v325 = vld [vmem:[#allocation2 + $0x30] sm:$0xff]
        %v326 = vld [vmem:[#allocation2 + $0x38] sm:$0xff]
        %v327 = vld [vmem:[#allocation2 + $0x40] sm:$0xff]
        %v328 = vld [vmem:[#allocation2 + $0x48] sm:$0xff]
        %337 = vrot.lane.b32.xlu0 %v320, 64
        %v338 = vpop.permute.xlu0 %337
        %339 = vrot.lane.b32.xlu0 %v321, 64
        %v340 = vpop.permute.xlu0 %339
        %341 = vrot.lane.b32.xlu0 %v322, 64
        %v342 = vpop.permute.xlu0 %341
        %343 = vrot.lane.b32.xlu0 %v323, 64
        %v344 = vpop.permute.xlu0 %343
        %345 = vrot.lane.b32.xlu0 %v324, 64
        %v346 = vpop.permute.xlu0 %345
        %347 = vrot.lane.b32.xlu0 %v325, 64
        %v348 = vpop.permute.xlu0 %347
        %349 = vrot.lane.b32.xlu0 %v326, 64
        %v350 = vpop.permute.xlu0 %349
        %351 = vrot.lane.b32.xlu0 %v327, 64
        %v352 = vpop.permute.xlu0 %351
        %v355 = vsel %vm264, %v319, %v338
        %v359 = vsel %vm264, %v320, %v340
        %v363 = vsel %vm264, %v321, %v342
        %v367 = vsel %vm264, %v322, %v344
        %v371 = vsel %vm264, %v323, %v346
        %v375 = vsel %vm264, %v324, %v348
        %v379 = vsel %vm264, %v325, %v350
        %v383 = vsel %vm264, %v326, %v352
        %v385 = vlaneseq
        %v386 = vshrl.u32 %v385, 7
        %v387 = vadd.s32 %v386, 8
        %v388 = vadd.s32 %v386, 16
        %v389 = vadd.s32 %v386, 24
        %v390 = vadd.s32 %v386, 32
        %v391 = vadd.s32 %v386, 40
        %v392 = vadd.s32 %v386, 48
        %v393 = vadd.s32 %v386, 56
        %v394 = vadd.s32 %v386, 64
        %v395 = vadd.s32 %v386, 72
        %v396 = vadd.s32 %v386, 80
        %v397 = vadd.s32 %v386, 88
        %v398 = vadd.s32 %v386, 96
        %v399 = vadd.s32 %v386, 104
        %v400 = vadd.s32 %v386, 112
        %v401 = vadd.s32 %v386, 120
        %vm402 = vcmp.lt.s32.totalorder %v386, 0
        %v403 = vsub.s32 0, %v386
        %v404 = vsel %vm402, %v403, %v386
        %v405 = vshrl.u32 %v404, 4
        %v406 = vand.u32 %v404, 15
        %v407 = vsub.s32 0, %v406
        %v408 = vsel %vm402, %v407, %v406
        %vm409 = vcmp.lt.s32.totalorder %v387, 0
        %v410 = vsub.s32 0, %v387
        %v411 = vsel %vm409, %v410, %v387
        %v412 = vshrl.u32 %v411, 4
        %v413 = vand.u32 %v411, 15
        %v414 = vsub.s32 0, %v413
        %v415 = vsel %vm409, %v414, %v413
        %vm416 = vcmp.lt.s32.totalorder %v388, 0
        %v417 = vsub.s32 0, %v388
        %v418 = vsel %vm416, %v417, %v388
        %v419 = vshrl.u32 %v418, 4
        %v420 = vand.u32 %v418, 15
        %v421 = vsub.s32 0, %v420
        %v422 = vsel %vm416, %v421, %v420
        %vm423 = vcmp.lt.s32.totalorder %v389, 0
        %v424 = vsub.s32 0, %v389
        %v425 = vsel %vm423, %v424, %v389
        %v426 = vshrl.u32 %v425, 4
        %v427 = vand.u32 %v425, 15
        %v428 = vsub.s32 0, %v427
        %v429 = vsel %vm423, %v428, %v427
        %vm430 = vcmp.lt.s32.totalorder %v390, 0
        %v431 = vsub.s32 0, %v390
        %v432 = vsel %vm430, %v431, %v390
        %v433 = vshrl.u32 %v432, 4
        %v434 = vand.u32 %v432, 15
        %v435 = vsub.s32 0, %v434
        %v436 = vsel %vm430, %v435, %v434
        %vm437 = vcmp.lt.s32.totalorder %v391, 0
        %v438 = vsub.s32 0, %v391
        %v439 = vsel %vm437, %v438, %v391
        %v440 = vshrl.u32 %v439, 4
        %v441 = vand.u32 %v439, 15
        %v442 = vsub.s32 0, %v441
        %v443 = vsel %vm437, %v442, %v441
        %vm444 = vcmp.lt.s32.totalorder %v392, 0
        %v445 = vsub.s32 0, %v392
        %v446 = vsel %vm444, %v445, %v392
        %v447 = vshrl.u32 %v446, 4
        %v448 = vand.u32 %v446, 15
        %v449 = vsub.s32 0, %v448
        %v450 = vsel %vm444, %v449, %v448
        %vm451 = vcmp.lt.s32.totalorder %v393, 0
        %v452 = vsub.s32 0, %v393
        %v453 = vsel %vm451, %v452, %v393
        %v454 = vshrl.u32 %v453, 4
        %v455 = vand.u32 %v453, 15
        %v456 = vsub.s32 0, %v455
        %v457 = vsel %vm451, %v456, %v455
        %vm458 = vcmp.lt.s32.totalorder %v394, 0
        %v459 = vsub.s32 0, %v394
        %v460 = vsel %vm458, %v459, %v394
        %v461 = vshrl.u32 %v460, 4
        %v462 = vand.u32 %v460, 15
        %v463 = vsub.s32 0, %v462
        %v464 = vsel %vm458, %v463, %v462
        %vm465 = vcmp.lt.s32.totalorder %v395, 0
        %v466 = vsub.s32 0, %v395
        %v467 = vsel %vm465, %v466, %v395
        %v468 = vshrl.u32 %v467, 4
        %v469 = vand.u32 %v467, 15
        %v470 = vsub.s32 0, %v469
        %v471 = vsel %vm465, %v470, %v469
        %vm472 = vcmp.lt.s32.totalorder %v396, 0
        %v473 = vsub.s32 0, %v396
        %v474 = vsel %vm472, %v473, %v396
        %v475 = vshrl.u32 %v474, 4
        %v476 = vand.u32 %v474, 15
        %v477 = vsub.s32 0, %v476
        %v478 = vsel %vm472, %v477, %v476
        %vm479 = vcmp.lt.s32.totalorder %v397, 0
        %v480 = vsub.s32 0, %v397
        %v481 = vsel %vm479, %v480, %v397
        %v482 = vshrl.u32 %v481, 4
        %v483 = vand.u32 %v481, 15
        %v484 = vsub.s32 0, %v483
        %v485 = vsel %vm479, %v484, %v483
        %vm486 = vcmp.lt.s32.totalorder %v398, 0
        %v487 = vsub.s32 0, %v398
        %v488 = vsel %vm486, %v487, %v398
        %v489 = vshrl.u32 %v488, 4
        %v490 = vand.u32 %v488, 15
        %v491 = vsub.s32 0, %v490
        %v492 = vsel %vm486, %v491, %v490
        %vm493 = vcmp.lt.s32.totalorder %v399, 0
        %v494 = vsub.s32 0, %v399
        %v495 = vsel %vm493, %v494, %v399
        %v496 = vshrl.u32 %v495, 4
        %v497 = vand.u32 %v495, 15
        %v498 = vsub.s32 0, %v497
        %v499 = vsel %vm493, %v498, %v497
        %vm500 = vcmp.lt.s32.totalorder %v400, 0
        %v501 = vsub.s32 0, %v400
        %v502 = vsel %vm500, %v501, %v400
        %v503 = vshrl.u32 %v502, 4
        %v504 = vand.u32 %v502, 15
        %v505 = vsub.s32 0, %v504
        %v506 = vsel %vm500, %v505, %v504
        %vm507 = vcmp.lt.s32.totalorder %v401, 0
        %v508 = vsub.s32 0, %v401
        %v509 = vsel %vm507, %v508, %v401
        %v510 = vshrl.u32 %v509, 4
        %v511 = vand.u32 %v509, 15
        %v512 = vsub.s32 0, %v511
        %v513 = vsel %vm507, %v512, %v511
        %vm514 = vcmp.ne.s32.totalorder %v408, 0
        %vm515 = vcmp.ne.s32.totalorder %v415, 0
        %vm516 = vcmp.ne.s32.totalorder %v422, 0
        %vm517 = vcmp.ne.s32.totalorder %v429, 0
        %vm518 = vcmp.ne.s32.totalorder %v436, 0
        %vm519 = vcmp.ne.s32.totalorder %v443, 0
        %vm520 = vcmp.ne.s32.totalorder %v450, 0
        %vm521 = vcmp.ne.s32.totalorder %v457, 0
        %vm522 = vcmp.ne.s32.totalorder %v464, 0
        %vm523 = vcmp.ne.s32.totalorder %v471, 0
        %vm524 = vcmp.ne.s32.totalorder %v478, 0
        %vm525 = vcmp.ne.s32.totalorder %v485, 0
        %vm526 = vcmp.ne.s32.totalorder %v492, 0
        %vm527 = vcmp.ne.s32.totalorder %v499, 0
        %vm528 = vcmp.ne.s32.totalorder %v506, 0
        %vm529 = vcmp.ne.s32.totalorder %v513, 0
        %vm530 = vcmp.lt.s32.totalorder %v408, 0
        %vm531 = vcmp.lt.s32.totalorder %v415, 0
        %vm532 = vcmp.lt.s32.totalorder %v422, 0
        %vm533 = vcmp.lt.s32.totalorder %v429, 0
        %vm534 = vcmp.lt.s32.totalorder %v436, 0
        %vm535 = vcmp.lt.s32.totalorder %v443, 0
        %vm536 = vcmp.lt.s32.totalorder %v450, 0
        %vm537 = vcmp.lt.s32.totalorder %v457, 0
        %vm538 = vcmp.lt.s32.totalorder %v464, 0
        %vm539 = vcmp.lt.s32.totalorder %v471, 0
        %vm540 = vcmp.lt.s32.totalorder %v478, 0
        %vm541 = vcmp.lt.s32.totalorder %v485, 0
        %vm542 = vcmp.lt.s32.totalorder %v492, 0
        %vm543 = vcmp.lt.s32.totalorder %v499, 0
        %vm544 = vcmp.lt.s32.totalorder %v506, 0
        %vm545 = vcmp.lt.s32.totalorder %v513, 0
        %vm546 = vmand %vm530, %vm514
        %vm547 = vmand %vm531, %vm515
        %vm548 = vmand %vm532, %vm516
        %vm549 = vmand %vm533, %vm517
        %vm550 = vmand %vm534, %vm518
        %vm551 = vmand %vm535, %vm519
        %vm552 = vmand %vm536, %vm520
        %vm553 = vmand %vm537, %vm521
        %vm554 = vmand %vm538, %vm522
        %vm555 = vmand %vm539, %vm523
        %vm556 = vmand %vm540, %vm524
        %vm557 = vmand %vm541, %vm525
        %vm558 = vmand %vm542, %vm526
        %vm559 = vmand %vm543, %vm527
        %vm560 = vmand %vm544, %vm528
        %vm561 = vmand %vm545, %vm529
        %v562 = vadd.s32 %v408, 16
        %v563 = vadd.s32 %v415, 16
        %v564 = vadd.s32 %v422, 16
        %v565 = vadd.s32 %v429, 16
        %v566 = vadd.s32 %v436, 16
        %v567 = vadd.s32 %v443, 16
        %v568 = vadd.s32 %v450, 16
        %v569 = vadd.s32 %v457, 16
        %v570 = vadd.s32 %v464, 16
        %v571 = vadd.s32 %v471, 16
        %v572 = vadd.s32 %v478, 16
        %v573 = vadd.s32 %v485, 16
        %v574 = vadd.s32 %v492, 16
        %v575 = vadd.s32 %v499, 16
        %v576 = vadd.s32 %v506, 16
        %v577 = vadd.s32 %v513, 16
        %v578 = vsel %vm546, %v562, %v408
        %v579 = vsel %vm547, %v563, %v415
        %v580 = vsel %vm548, %v564, %v422
        %v581 = vsel %vm549, %v565, %v429
        %v582 = vsel %vm550, %v566, %v436
        %v583 = vsel %vm551, %v567, %v443
        %v584 = vsel %vm552, %v568, %v450
        %v585 = vsel %vm553, %v569, %v457
        %v586 = vsel %vm554, %v570, %v464
        %v587 = vsel %vm555, %v571, %v471
        %v588 = vsel %vm556, %v572, %v478
        %v589 = vsel %vm557, %v573, %v485
        %v590 = vsel %vm558, %v574, %v492
        %v591 = vsel %vm559, %v575, %v499
        %v592 = vsel %vm560, %v576, %v506
        %v593 = vsel %vm561, %v577, %v513
        %s594 = scalar_lea.vmem [#allocation6], 96
        %v595 = vld [vmem:[%s594] sm:$0xf]
        %v596 = vld [vmem:[%s594 + $0x4] sm:$0xf]
        %v597 = vld [vmem:[%s594 + $0x8] sm:$0xf]
        %v598 = vld [vmem:[%s594 + $0xc] sm:$0xf]
        %v599 = vld [vmem:[%s594 + $0x10] sm:$0xf]
        %v600 = vld [vmem:[%s594 + $0x14] sm:$0xf]
        %v601 = vld [vmem:[%s594 + $0x18] sm:$0xf]
        %v602 = vld [vmem:[%s594 + $0x1c] sm:$0xf]
        %v603 = vld [vmem:[%s594 + $0x20] sm:$0xf]
        %v604 = vld [vmem:[%s594 + $0x24] sm:$0xf]
        %v605 = vld [vmem:[%s594 + $0x28] sm:$0xf]
        %v606 = vld [vmem:[%s594 + $0x2c] sm:$0xf]
        %v607 = vld [vmem:[%s594 + $0x30] sm:$0xf]
        %v608 = vld [vmem:[%s594 + $0x34] sm:$0xf]
        %v609 = vld [vmem:[%s594 + $0x38] sm:$0xf]
        %v610 = vld [vmem:[%s594 + $0x3c] sm:$0xf]
        %v611 = vld [vmem:[%s594 + $0x40] sm:$0xf]
        %v612 = vld [vmem:[%s594 + $0x44] sm:$0xf]
        %v613 = vld [vmem:[%s594 + $0x48] sm:$0xf]
        %v614 = vld [vmem:[%s594 + $0x4c] sm:$0xf]
        %v615 = vld [vmem:[%s594 + $0x50] sm:$0xf]
        %v616 = vld [vmem:[%s594 + $0x54] sm:$0xf]
        %v617 = vld [vmem:[%s594 + $0x58] sm:$0xf]
        %v618 = vld [vmem:[%s594 + $0x5c] sm:$0xf]
        %vm619 = vsmask.f32 256
        %v620 = vshrl.u32 %v355, 16
        %v622 = vrot.slane %v620, 7
        %v623 = vshll.u32 %v355, 16
        %v625 = vor.u32 %v622, %v623
        %v626 = vshrl.u32 %v321, 16
        %v628 = vrot.slane %v626, 7
        %v629 = vshll.u32 %v321, 16
        %v631 = vor.u32 %v628, %v629
        %v632 = vshrl.u32 %v359, 16
        %v634 = vrot.slane %v632, 7
        %v635 = vshll.u32 %v359, 16
        %v637 = vor.u32 %v634, %v635
        %v638 = vsel %vm619, %v622, %v637
        %v639 = vshrl.u32 %v322, 16
        %v641 = vrot.slane %v639, 7
        %v642 = vshll.u32 %v322, 16
        %v644 = vor.u32 %v641, %v642
        %v645 = vsel %vm619, %v628, %v644
        %v646 = vshrl.u32 %v363, 16
        %v648 = vrot.slane %v646, 7
        %v649 = vshll.u32 %v363, 16
        %v651 = vor.u32 %v648, %v649
        %v652 = vsel %vm619, %v634, %v651
        %v653 = vshrl.u32 %v323, 16
        %v655 = vrot.slane %v653, 7
        %v656 = vshll.u32 %v323, 16
        %v658 = vor.u32 %v655, %v656
        %v659 = vsel %vm619, %v641, %v658
        %v660 = vshrl.u32 %v367, 16
        %v662 = vrot.slane %v660, 7
        %v663 = vshll.u32 %v367, 16
        %v665 = vor.u32 %v662, %v663
        %v666 = vsel %vm619, %v648, %v665
        %v667 = vshrl.u32 %v324, 16
        %v669 = vrot.slane %v667, 7
        %v670 = vshll.u32 %v324, 16
        %v672 = vor.u32 %v669, %v670
        %v673 = vsel %vm619, %v655, %v672
        %v674 = vshrl.u32 %v371, 16
        %v676 = vrot.slane %v674, 7
        %v677 = vshll.u32 %v371, 16
        %v679 = vor.u32 %v676, %v677
        %v680 = vsel %vm619, %v662, %v679
        %v681 = vshrl.u32 %v325, 16
        %v683 = vrot.slane %v681, 7
        %v684 = vshll.u32 %v325, 16
        %v686 = vor.u32 %v683, %v684
        %v687 = vsel %vm619, %v669, %v686
        %v688 = vshrl.u32 %v375, 16
        %v690 = vrot.slane %v688, 7
        %v691 = vshll.u32 %v375, 16
        %v693 = vor.u32 %v690, %v691
        %v694 = vsel %vm619, %v676, %v693
        %v695 = vshrl.u32 %v326, 16
        %v697 = vrot.slane %v695, 7
        %v698 = vshll.u32 %v326, 16
        %v700 = vor.u32 %v697, %v698
        %v701 = vsel %vm619, %v683, %v700
        %v702 = vshrl.u32 %v379, 16
        %v704 = vrot.slane %v702, 7
        %v705 = vshll.u32 %v379, 16
        %v707 = vor.u32 %v704, %v705
        %v708 = vsel %vm619, %v690, %v707
        %v710 = vshrl.u32 %v327, 16
        %v712 = vrot.slane %v710, 7
        %v713 = vshll.u32 %v327, 16
        %v715 = vor.u32 %v712, %v713
        %v716 = vsel %vm619, %v697, %v715
        %v717 = vshrl.u32 %v383, 16
        %v719 = vrot.slane %v717, 7
        %v720 = vshll.u32 %v383, 16
        %v722 = vor.u32 %v719, %v720
        %v723 = vsel %vm619, %v704, %v722
        %v725 = vshrl.u32 %v328, 16
        %v727 = vrot.slane %v725, 7
        %v728 = vshll.u32 %v328, 16
        %v730 = vor.u32 %v727, %v728
        %v731 = vsel %vm619, %v712, %v730
        %vm748 = vcmask 1040384
        %vm749 = vmand %vm748, %vm619
        %v750 = vsel %vm749, %v355, %v625
        %v751 = vsel %vm749, %v321, %v631
        %vm752 = vcmp.eq.s32.totalorder %v578, 0
        %vm753 = vcmp.eq.s32.totalorder %v579, 0
        %vm754 = vcmp.eq.s32.totalorder %v580, 0
        %vm755 = vcmp.eq.s32.totalorder %v581, 0
        %vm756 = vcmp.eq.s32.totalorder %v582, 0
        %vm757 = vcmp.eq.s32.totalorder %v583, 0
        %vm758 = vcmp.eq.s32.totalorder %v584, 0
        %vm759 = vcmp.eq.s32.totalorder %v585, 0
        %vm760 = vcmp.eq.s32.totalorder %v586, 0
        %vm761 = vcmp.eq.s32.totalorder %v587, 0
        %vm762 = vcmp.eq.s32.totalorder %v588, 0
        %vm763 = vcmp.eq.s32.totalorder %v589, 0
        %vm764 = vcmp.eq.s32.totalorder %v590, 0
        %vm765 = vcmp.eq.s32.totalorder %v591, 0
        %vm766 = vcmp.eq.s32.totalorder %v592, 0
        %vm767 = vcmp.eq.s32.totalorder %v593, 0
        %v768 = vsel %vm752, 1, 0
        %v769 = vsel %vm753, 1, 0
        %v770 = vsel %vm754, 1, 0
        %v771 = vsel %vm755, 1, 0
        %v772 = vsel %vm756, 1, 0
        %v773 = vsel %vm757, 1, 0
        %v774 = vsel %vm758, 1, 0
        %v775 = vsel %vm759, 1, 0
        %v776 = vsel %vm760, 1, 0
        %v777 = vsel %vm761, 1, 0
        %v778 = vsel %vm762, 1, 0
        %v779 = vsel %vm763, 1, 0
        %v780 = vsel %vm764, 1, 0
        %v781 = vsel %vm765, 1, 0
        %v782 = vsel %vm766, 1, 0
        %v783 = vsel %vm767, 1, 0
        %vm784 = vcmp.eq.s32.totalorder %v768, 1
        %vm785 = vcmp.eq.s32.totalorder %v769, 1
        %vm786 = vcmp.eq.s32.totalorder %v770, 1
        %vm787 = vcmp.eq.s32.totalorder %v771, 1
        %vm788 = vcmp.eq.s32.totalorder %v772, 1
        %vm789 = vcmp.eq.s32.totalorder %v773, 1
        %vm790 = vcmp.eq.s32.totalorder %v774, 1
        %vm791 = vcmp.eq.s32.totalorder %v775, 1
        %vm792 = vcmp.eq.s32.totalorder %v776, 1
        %vm793 = vcmp.eq.s32.totalorder %v777, 1
        %vm794 = vcmp.eq.s32.totalorder %v778, 1
        %vm795 = vcmp.eq.s32.totalorder %v779, 1
        %vm796 = vcmp.eq.s32.totalorder %v780, 1
        %vm797 = vcmp.eq.s32.totalorder %v781, 1
        %vm798 = vcmp.eq.s32.totalorder %v782, 1
        %vm799 = vcmp.eq.s32.totalorder %v783, 1
        %vm800 = vmpackc.low %vm784, %vm784
        %vm801 = vmpackc.low %vm785, %vm785
        %vm802 = vmpackc.low %vm786, %vm786
        %vm803 = vmpackc.low %vm787, %vm787
        %vm804 = vmpackc.low %vm788, %vm788
        %vm805 = vmpackc.low %vm789, %vm789
        %vm806 = vmpackc.low %vm790, %vm790
        %vm807 = vmpackc.low %vm791, %vm791
        %vm808 = vmpackc.low %vm792, %vm792
        %vm809 = vmpackc.low %vm793, %vm793
        %vm810 = vmpackc.low %vm794, %vm794
        %vm811 = vmpackc.low %vm795, %vm795
        %vm812 = vmpackc.low %vm796, %vm796
        %vm813 = vmpackc.low %vm797, %vm797
        %vm814 = vmpackc.low %vm798, %vm798
        %vm815 = vmpackc.low %vm799, %vm799
        %v816 = vsel %vm800, 65537, 0
        %v817 = vsel %vm801, 65537, 0
        %v818 = vsel %vm802, 65537, 0
        %v819 = vsel %vm803, 65537, 0
        %v820 = vsel %vm804, 65537, 0
        %v821 = vsel %vm805, 65537, 0
        %v822 = vsel %vm806, 65537, 0
        %v823 = vsel %vm807, 65537, 0
        %v824 = vsel %vm808, 65537, 0
        %v825 = vsel %vm809, 65537, 0
        %v826 = vsel %vm810, 65537, 0
        %v827 = vsel %vm811, 65537, 0
        %v828 = vsel %vm812, 65537, 0
        %v829 = vsel %vm813, 65537, 0
        %v830 = vsel %vm814, 65537, 0
        %v831 = vsel %vm815, 65537, 0
        %v832 = vunpack.c.l.b16 %v816
        %v833 = vunpack.c.l.b16 %v817
        %v834 = vunpack.c.l.b16 %v818
        %v835 = vunpack.c.l.b16 %v819
        %v836 = vunpack.c.l.b16 %v820
        %v837 = vunpack.c.l.b16 %v821
        %v838 = vunpack.c.l.b16 %v822
        %v839 = vunpack.c.l.b16 %v823
        %v840 = vunpack.c.l.b16 %v824
        %v841 = vunpack.c.l.b16 %v825
        %v842 = vunpack.c.l.b16 %v826
        %v843 = vunpack.c.l.b16 %v827
        %v844 = vunpack.c.l.b16 %v828
        %v845 = vunpack.c.l.b16 %v829
        %v846 = vunpack.c.l.b16 %v830
        %v847 = vunpack.c.l.b16 %v831
        %v848 = vpack.c.b16 %v833, %v832
        %v849 = vpack.c.b16 %v835, %v834
        %v850 = vpack.c.b16 %v837, %v836
        %v851 = vpack.c.b16 %v839, %v838
        %v852 = vpack.c.b16 %v841, %v840
        %v853 = vpack.c.b16 %v843, %v842
        %v854 = vpack.c.b16 %v845, %v844
        %v855 = vpack.c.b16 %v847, %v846
        %vm856 = vcmp.ne.s16.totalorder %v848, 0
        %vm857 = vcmp.ne.s16.totalorder %v849, 0
        %vm858 = vcmp.ne.s16.totalorder %v850, 0
        %vm859 = vcmp.ne.s16.totalorder %v851, 0
        %vm860 = vcmp.ne.s16.totalorder %v852, 0
        %vm861 = vcmp.ne.s16.totalorder %v853, 0
        %vm862 = vcmp.ne.s16.totalorder %v854, 0
        %vm863 = vcmp.ne.s16.totalorder %v855, 0
        %v864 = vsel %vm856, 0, %v750
        %v865 = vsel %vm856, 0, %v751
        %v866 = vsel %vm857, 0, %v638
        %v867 = vsel %vm857, 0, %v645
        %v868 = vsel %vm858, 0, %v652
        %v869 = vsel %vm858, 0, %v659
        %v870 = vsel %vm859, 0, %v666
        %v871 = vsel %vm859, 0, %v673
        %v872 = vsel %vm860, 0, %v680
        %v873 = vsel %vm860, 0, %v687
        %v874 = vsel %vm861, 0, %v694
        %v875 = vsel %vm861, 0, %v701
        %v876 = vsel %vm862, 0, %v708
        %v877 = vsel %vm862, 0, %v716
        %v878 = vsel %vm863, 0, %v723
        %v879 = vsel %vm863, 0, %v731
        %v880 = vld [vmem:[#allocation6] sm:$0xf]
        %v881 = vld [vmem:[#allocation6 + $0x4] sm:$0xf]
        %v882 = vld [vmem:[#allocation6 + $0x8] sm:$0xf]
        %v883 = vld [vmem:[#allocation6 + $0xc] sm:$0xf]
        %v884 = vld [vmem:[#allocation6 + $0x10] sm:$0xf]
        %v885 = vld [vmem:[#allocation6 + $0x14] sm:$0xf]
        %v886 = vld [vmem:[#allocation6 + $0x18] sm:$0xf]
        %v887 = vld [vmem:[#allocation6 + $0x1c] sm:$0xf]
        %v888 = vld [vmem:[#allocation6 + $0x20] sm:$0xf]
        %v889 = vld [vmem:[#allocation6 + $0x24] sm:$0xf]
        %v890 = vld [vmem:[#allocation6 + $0x28] sm:$0xf]
        %v891 = vld [vmem:[#allocation6 + $0x2c] sm:$0xf]
        %v892 = vld [vmem:[#allocation6 + $0x30] sm:$0xf]
        %v893 = vld [vmem:[#allocation6 + $0x34] sm:$0xf]
        %v894 = vld [vmem:[#allocation6 + $0x38] sm:$0xf]
        %v895 = vld [vmem:[#allocation6 + $0x3c] sm:$0xf]
        %v896 = vld [vmem:[#allocation6 + $0x40] sm:$0xf]
        %v897 = vld [vmem:[#allocation6 + $0x44] sm:$0xf]
        %v898 = vld [vmem:[#allocation6 + $0x48] sm:$0xf]
        %v899 = vld [vmem:[#allocation6 + $0x4c] sm:$0xf]
        %v900 = vld [vmem:[#allocation6 + $0x50] sm:$0xf]
        %v901 = vld [vmem:[#allocation6 + $0x54] sm:$0xf]
        %v902 = vld [vmem:[#allocation6 + $0x58] sm:$0xf]
        %v903 = vld [vmem:[#allocation6 + $0x5c] sm:$0xf]
        %v928 = vunpack.c.l.b16 %v880
        %v929 = vunpack.c.l.b16 %v881
        %v930 = vunpack.c.l.b16 %v882
        %v931 = vunpack.c.l.b16 %v883
        %v932 = vunpack.c.l.b16 %v884
        %v933 = vunpack.c.l.b16 %v885
        %v934 = vunpack.c.l.b16 %v886
        %v935 = vunpack.c.l.b16 %v887
        %v936 = vunpack.c.l.b16 %v888
        %v937 = vunpack.c.l.b16 %v889
        %v938 = vunpack.c.l.b16 %v890
        %v939 = vunpack.c.l.b16 %v891
        %v940 = vunpack.c.l.b16 %v892
        %v941 = vunpack.c.l.b16 %v893
        %v942 = vunpack.c.l.b16 %v894
        %v943 = vunpack.c.l.b16 %v895
        %v944 = vunpack.c.l.b16 %v896
        %v945 = vunpack.c.l.b16 %v897
        %v946 = vunpack.c.l.b16 %v898
        %v947 = vunpack.c.l.b16 %v899
        %v948 = vunpack.c.l.b16 %v900
        %v949 = vunpack.c.l.b16 %v901
        %v950 = vunpack.c.l.b16 %v902
        %v951 = vunpack.c.l.b16 %v903
        %v952 = vpack.c.b16 %v929, %v928
        %v953 = vpack.c.b16 %v931, %v930
        %v954 = vpack.c.b16 %v933, %v932
        %v955 = vpack.c.b16 %v935, %v934
        %v956 = vpack.c.b16 %v937, %v936
        %v957 = vpack.c.b16 %v939, %v938
        %v958 = vpack.c.b16 %v941, %v940
        %v959 = vpack.c.b16 %v943, %v942
        %v960 = vpack.c.b16 %v945, %v944
        %v961 = vpack.c.b16 %v947, %v946
        %v962 = vpack.c.b16 %v949, %v948
        %v963 = vpack.c.b16 %v951, %v950
        %v977 = vsel %vm264, %v865, 0
        %v980 = vsel %vm264, %v867, 0
        %v983 = vsel %vm264, %v869, 0
        %v986 = vsel %vm264, %v871, 0
        %v989 = vsel %vm264, %v873, 0
        %v992 = vsel %vm264, %v875, 0
        %v995 = vsel %vm264, %v877, 0
        %v998 = vsel %vm264, %v879, 0
        %1000 = vmatprep.subr.bf16.mxu0 0
        %1001 = vmatpush1.bf16.msra.mxu0 %v952
        %1002 = vmatprep.subr.bf16.mxu0 0
        %1003 = vmatpush1.bf16.msra.mxu0 %v953
        %1004 = vmatprep.subr.bf16.mxu0 0
        %1005 = vmatpush1.bf16.msra.mxu0 %v954
        %1006 = vmatprep.subr.bf16.mxu0 0
        %1007 = vmatpush1.bf16.msra.mxu0 %v955
        %1008 = vmatprep.subr.bf16.mxu0 0
        %1009 = vmatpush1.bf16.msra.mxu0 %v956
        %1010 = vmatprep.subr.bf16.mxu0 0
        %1011 = vmatpush1.bf16.msra.mxu0 %v957
        %1012 = vmatprep.subr.bf16.mxu0 0
        %1013 = vmatpush1.bf16.msra.mxu0 %v958
        %1014 = vmatprep.subr.bf16.mxu0 0
        %1015 = vmatpush1.bf16.msra.mxu0 %v959
        %1016 = vmatprep.subr.bf16.mxu0 0
        %1017 = vmatpush1.bf16.msra.mxu0 %v960
        %1018 = vmatprep.subr.bf16.mxu0 0
        %1019 = vmatpush1.bf16.msra.mxu0 %v961
        %1020 = vmatprep.subr.bf16.mxu0 0
        %1021 = vmatpush1.bf16.msra.mxu0 %v962
        %1022 = vmatprep.subr.bf16.mxu0 0
        %1023 = vmatpush1.bf16.msra.mxu0 %v963
        %1024 = vmatprep.subr.bf16.mxu0 0
        %1025 = vmatpush1.bf16.msra.mxu0 0
        %1026 = vmatprep.subr.bf16.mxu0 0
        %1027 = vmatpush1.bf16.msra.mxu0 0
        %1028 = vmatprep.subr.bf16.mxu0 0
        %1029 = vmatpush1.bf16.msra.mxu0 0
        %1030 = vmatprep.subr.bf16.mxu0 0
        %1031 = vmatpush1.bf16.msra.mxu0 0
        %1032 = vmatprep.mubr.bf16.mxu0 %v977
        %1033 = vmatmul.mubr.bf16.gmra.mrb[0].mxu0 %v864
        %v1034 = vpop.f32.mrb[0].mxu0
        %v1035 = vadd.f32 0.0, %v1034
        %v1036 = vpop.f32.mrb[0].mxu0
        %v1037 = vpop.f32.mrb[0].mxu0
        %v1038 = vadd.f32 0.0, %v1037
        %v1039 = vpop.f32.mrb[0].mxu0
        %1040 = vmatprep.mubr.bf16.mxu0 %v980
        %1041 = vmatmul.mubr.bf16.gmra.mrb[0].mxu0 %v866
        %v1042 = vpop.f32.mrb[0].mxu0
        %v1043 = vadd.f32 0.0, %v1042
        %v1044 = vpop.f32.mrb[0].mxu0
        %v1045 = vpop.f32.mrb[0].mxu0
        %v1046 = vadd.f32 0.0, %v1045
        %v1047 = vpop.f32.mrb[0].mxu0
        %1048 = vmatprep.mubr.bf16.mxu0 %v983
        %1049 = vmatmul.mubr.bf16.gmra.mrb[0].mxu0 %v868
        %v1050 = vpop.f32.mrb[0].mxu0
        %v1051 = vadd.f32 0.0, %v1050
        %v1052 = vpop.f32.mrb[0].mxu0
        %v1053 = vpop.f32.mrb[0].mxu0
        %v1054 = vadd.f32 0.0, %v1053
        %v1055 = vpop.f32.mrb[0].mxu0
        %1056 = vmatprep.mubr.bf16.mxu0 %v986
        %1057 = vmatmul.mubr.bf16.gmra.mrb[0].mxu0 %v870
        %v1058 = vpop.f32.mrb[0].mxu0
        %v1059 = vadd.f32 0.0, %v1058
        %v1060 = vpop.f32.mrb[0].mxu0
        %v1061 = vpop.f32.mrb[0].mxu0
        %v1062 = vadd.f32 0.0, %v1061
        %v1063 = vpop.f32.mrb[0].mxu0
        %1064 = vmatprep.mubr.bf16.mxu0 %v989
        %1065 = vmatmul.mubr.bf16.gmra.mrb[0].mxu0 %v872
        %v1066 = vpop.f32.mrb[0].mxu0
        %v1067 = vadd.f32 0.0, %v1066
        %v1068 = vpop.f32.mrb[0].mxu0
        %v1069 = vpop.f32.mrb[0].mxu0
        %v1070 = vadd.f32 0.0, %v1069
        %v1071 = vpop.f32.mrb[0].mxu0
        %1072 = vmatprep.mubr.bf16.mxu0 %v992
        %1073 = vmatmul.mubr.bf16.gmra.mrb[0].mxu0 %v874
        %v1074 = vpop.f32.mrb[0].mxu0
        %v1075 = vadd.f32 0.0, %v1074
        %v1076 = vpop.f32.mrb[0].mxu0
        %v1077 = vpop.f32.mrb[0].mxu0
        %v1078 = vadd.f32 0.0, %v1077
        %v1079 = vpop.f32.mrb[0].mxu0
        %1080 = vmatprep.mubr.bf16.mxu0 %v995
        %1081 = vmatmul.mubr.bf16.gmra.mrb[0].mxu0 %v876
        %v1082 = vpop.f32.mrb[0].mxu0
        %v1083 = vadd.f32 0.0, %v1082
        %v1084 = vpop.f32.mrb[0].mxu0
        %v1085 = vpop.f32.mrb[0].mxu0
        %v1086 = vadd.f32 0.0, %v1085
        %v1087 = vpop.f32.mrb[0].mxu0
        %1088 = vmatprep.mubr.bf16.mxu0 %v998
        %1089 = vmatmul.mubr.bf16.gmra.mrb[0].mxu0 %v878
        %v1090 = vpop.f32.mrb[0].mxu0
        %v1091 = vadd.f32 0.0, %v1090
        %v1092 = vpop.f32.mrb[0].mxu0
        %v1093 = vpop.f32.mrb[0].mxu0
        %v1094 = vadd.f32 0.0, %v1093
        %v1095 = vpop.f32.mrb[0].mxu0
        %1096 = vdwg.mxu0
        %v1121 = vunpack.c.l.b16 %v595
        %v1122 = vunpack.c.l.b16 %v596
        %v1123 = vunpack.c.l.b16 %v597
        %v1124 = vunpack.c.l.b16 %v598
        %v1125 = vunpack.c.l.b16 %v599
        %v1126 = vunpack.c.l.b16 %v600
        %v1127 = vunpack.c.l.b16 %v601
        %v1128 = vunpack.c.l.b16 %v602
        %v1129 = vunpack.c.l.b16 %v603
        %v1130 = vunpack.c.l.b16 %v604
        %v1131 = vunpack.c.l.b16 %v605
        %v1132 = vunpack.c.l.b16 %v606
        %v1133 = vunpack.c.l.b16 %v607
        %v1134 = vunpack.c.l.b16 %v608
        %v1135 = vunpack.c.l.b16 %v609
        %v1136 = vunpack.c.l.b16 %v610
        %v1137 = vunpack.c.l.b16 %v611
        %v1138 = vunpack.c.l.b16 %v612
        %v1139 = vunpack.c.l.b16 %v613
        %v1140 = vunpack.c.l.b16 %v614
        %v1141 = vunpack.c.l.b16 %v615
        %v1142 = vunpack.c.l.b16 %v616
        %v1143 = vunpack.c.l.b16 %v617
        %v1144 = vunpack.c.l.b16 %v618
        %v1145 = vpack.c.b16 %v1122, %v1121
        %v1146 = vpack.c.b16 %v1124, %v1123
        %v1147 = vpack.c.b16 %v1126, %v1125
        %v1148 = vpack.c.b16 %v1128, %v1127
        %v1149 = vpack.c.b16 %v1130, %v1129
        %v1150 = vpack.c.b16 %v1132, %v1131
        %v1151 = vpack.c.b16 %v1134, %v1133
        %v1152 = vpack.c.b16 %v1136, %v1135
        %v1153 = vpack.c.b16 %v1138, %v1137
        %v1154 = vpack.c.b16 %v1140, %v1139
        %v1155 = vpack.c.b16 %v1142, %v1141
        %v1156 = vpack.c.b16 %v1144, %v1143
        %v1169 = vsel %vm264, %v321, 0
        %v1171 = vsel %vm264, %v322, 0
        %v1173 = vsel %vm264, %v323, 0
        %v1175 = vsel %vm264, %v324, 0
        %v1177 = vsel %vm264, %v325, 0
        %v1179 = vsel %vm264, %v326, 0
        %v1181 = vsel %vm264, %v327, 0
        %v1183 = vsel %vm264, %v328, 0
        %1185 = vmatprep.subr.bf16.mxu0 0
        %1186 = vmatpush1.bf16.msra.mxu0 %v1145
        %1187 = vmatprep.subr.bf16.mxu0 0
        %1188 = vmatpush1.bf16.msra.mxu0 %v1146
        %1189 = vmatprep.subr.bf16.mxu0 0
        %1190 = vmatpush1.bf16.msra.mxu0 %v1147
        %1191 = vmatprep.subr.bf16.mxu0 0
        %1192 = vmatpush1.bf16.msra.mxu0 %v1148
        %1193 = vmatprep.subr.bf16.mxu0 0
        %1194 = vmatpush1.bf16.msra.mxu0 %v1149
        %1195 = vmatprep.subr.bf16.mxu0 0
        %1196 = vmatpush1.bf16.msra.mxu0 %v1150
        %1197 = vmatprep.subr.bf16.mxu0 0
        %1198 = vmatpush1.bf16.msra.mxu0 %v1151
        %1199 = vmatprep.subr.bf16.mxu0 0
        %1200 = vmatpush1.bf16.msra.mxu0 %v1152
        %1201 = vmatprep.subr.bf16.mxu0 0
        %1202 = vmatpush1.bf16.msra.mxu0 %v1153
        %1203 = vmatprep.subr.bf16.mxu0 0
        %1204 = vmatpush1.bf16.msra.mxu0 %v1154
        %1205 = vmatprep.subr.bf16.mxu0 0
        %1206 = vmatpush1.bf16.msra.mxu0 %v1155
        %1207 = vmatprep.subr.bf16.mxu0 0
        %1208 = vmatpush1.bf16.msra.mxu0 %v1156
        %1209 = vmatprep.subr.bf16.mxu0 0
        %1210 = vmatpush1.bf16.msra.mxu0 0
        %1211 = vmatprep.subr.bf16.mxu0 0
        %1212 = vmatpush1.bf16.msra.mxu0 0
        %1213 = vmatprep.subr.bf16.mxu0 0
        %1214 = vmatpush1.bf16.msra.mxu0 0
        %1215 = vmatprep.subr.bf16.mxu0 0
        %1216 = vmatpush1.bf16.msra.mxu0 0
        %1217 = vmatprep.mubr.bf16.mxu0 %v1169
        %1218 = vmatmul.mubr.bf16.gmra.mrb[0].mxu0 %v355
        %v1219 = vpop.f32.mrb[0].mxu0
        %v1220 = vadd.f32 %v1035, %v1219
        %v1221 = vpop.f32.mrb[0].mxu0
        %v1222 = vpop.f32.mrb[0].mxu0
        %v1223 = vadd.f32 %v1038, %v1222
        %v1224 = vpop.f32.mrb[0].mxu0
        %1225 = vmatprep.mubr.bf16.mxu0 %v1171
        %1226 = vmatmul.mubr.bf16.gmra.mrb[0].mxu0 %v359
        %v1227 = vpop.f32.mrb[0].mxu0
        %v1228 = vadd.f32 %v1043, %v1227
        %v1229 = vpop.f32.mrb[0].mxu0
        %v1230 = vpop.f32.mrb[0].mxu0
        %v1231 = vadd.f32 %v1046, %v1230
        %v1232 = vpop.f32.mrb[0].mxu0
        %1233 = vmatprep.mubr.bf16.mxu0 %v1173
        %1234 = vmatmul.mubr.bf16.gmra.mrb[0].mxu0 %v363
        %v1235 = vpop.f32.mrb[0].mxu0
        %v1236 = vadd.f32 %v1051, %v1235
        %v1237 = vpop.f32.mrb[0].mxu0
        %v1238 = vpop.f32.mrb[0].mxu0
        %v1239 = vadd.f32 %v1054, %v1238
        %v1240 = vpop.f32.mrb[0].mxu0
        %1241 = vmatprep.mubr.bf16.mxu0 %v1175
        %1242 = vmatmul.mubr.bf16.gmra.mrb[0].mxu0 %v367
        %v1243 = vpop.f32.mrb[0].mxu0
        %v1244 = vadd.f32 %v1059, %v1243
        %v1245 = vpop.f32.mrb[0].mxu0
        %v1246 = vpop.f32.mrb[0].mxu0
        %v1247 = vadd.f32 %v1062, %v1246
        %v1248 = vpop.f32.mrb[0].mxu0
        %1249 = vmatprep.mubr.bf16.mxu0 %v1177
        %1250 = vmatmul.mubr.bf16.gmra.mrb[0].mxu0 %v371
        %v1251 = vpop.f32.mrb[0].mxu0
        %v1252 = vadd.f32 %v1067, %v1251
        %v1253 = vpop.f32.mrb[0].mxu0
        %v1254 = vpop.f32.mrb[0].mxu0
        %v1255 = vadd.f32 %v1070, %v1254
        %v1256 = vpop.f32.mrb[0].mxu0
        %1257 = vmatprep.mubr.bf16.mxu0 %v1179
        %1258 = vmatmul.mubr.bf16.gmra.mrb[0].mxu0 %v375
        %v1259 = vpop.f32.mrb[0].mxu0
        %v1260 = vadd.f32 %v1075, %v1259
        %v1261 = vpop.f32.mrb[0].mxu0
        %v1262 = vpop.f32.mrb[0].mxu0
        %v1263 = vadd.f32 %v1078, %v1262
        %v1264 = vpop.f32.mrb[0].mxu0
        %1265 = vmatprep.mubr.bf16.mxu0 %v1181
        %1266 = vmatmul.mubr.bf16.gmra.mrb[0].mxu0 %v379
        %v1267 = vpop.f32.mrb[0].mxu0
        %v1268 = vadd.f32 %v1083, %v1267
        %v1269 = vpop.f32.mrb[0].mxu0
        %v1270 = vpop.f32.mrb[0].mxu0
        %v1271 = vadd.f32 %v1086, %v1270
        %v1272 = vpop.f32.mrb[0].mxu0
        %1273 = vmatprep.mubr.bf16.mxu0 %v1183
        %1274 = vmatmul.mubr.bf16.gmra.mrb[0].mxu0 %v383
        %v1275 = vpop.f32.mrb[0].mxu0
        %v1276 = vadd.f32 %v1091, %v1275
        %v1277 = vpop.f32.mrb[0].mxu0
        %v1278 = vpop.f32.mrb[0].mxu0
        %v1279 = vadd.f32 %v1094, %v1278
        %v1280 = vpop.f32.mrb[0].mxu0
        %1281 = vdwg.mxu0
        %vm1282 = vsmask.f32 7424
        %v1283 = vrot.slane %v623, 1
        %v1284 = vor.u32 %v620, %v1283
        %v1285 = vrot.slane %v635, 1
        %v1286 = vsel %vm1282, %v1284, %v1285
        %v1287 = vrot.slane %v629, 1
        %v1288 = vor.u32 %v626, %v1287
        %v1289 = vrot.slane %v642, 1
        %v1290 = vsel %vm1282, %v1288, %v1289
        %v1291 = vor.u32 %v632, %v1285
        %v1292 = vrot.slane %v649, 1
        %v1293 = vsel %vm1282, %v1291, %v1292
        %v1294 = vor.u32 %v639, %v1289
        %v1295 = vrot.slane %v656, 1
        %v1296 = vsel %vm1282, %v1294, %v1295
        %v1297 = vor.u32 %v646, %v1292
        %v1298 = vrot.slane %v663, 1
        %v1299 = vsel %vm1282, %v1297, %v1298
        %v1300 = vor.u32 %v653, %v1295
        %v1301 = vrot.slane %v670, 1
        %v1302 = vsel %vm1282, %v1300, %v1301
        %v1303 = vor.u32 %v660, %v1298
        %v1304 = vrot.slane %v677, 1
        %v1305 = vsel %vm1282, %v1303, %v1304
        %v1306 = vor.u32 %v667, %v1301
        %v1307 = vrot.slane %v684, 1
        %v1308 = vsel %vm1282, %v1306, %v1307
        %v1309 = vor.u32 %v674, %v1304
        %v1310 = vrot.slane %v691, 1
        %v1311 = vsel %vm1282, %v1309, %v1310
        %v1312 = vor.u32 %v681, %v1307
        %v1313 = vrot.slane %v698, 1
        %v1314 = vsel %vm1282, %v1312, %v1313
        %v1315 = vor.u32 %v688, %v1310
        %v1316 = vrot.slane %v705, 1
        %v1317 = vsel %vm1282, %v1315, %v1316
        %v1318 = vor.u32 %v695, %v1313
        %v1319 = vrot.slane %v713, 1
        %v1320 = vsel %vm1282, %v1318, %v1319
        %v1321 = vor.u32 %v702, %v1316
        %v1322 = vrot.slane %v720, 1
        %v1323 = vsel %vm1282, %v1321, %v1322
        %v1324 = vor.u32 %v710, %v1319
        %v1325 = vrot.slane %v728, 1
        %v1326 = vsel %vm1282, %v1324, %v1325
        %v1327 = vor.u32 %v717, %v1322
        %v1328 = vor.u32 %v725, %v1325
        %vm1345 = vcmask 1047552
        %vm1346 = vmand %vm1345, %vm1282
        %v1347 = vsel %vm1346, %v1327, %v383
        %v1348 = vsel %vm1346, %v1328, %v328
        %vm1349 = vcmp.eq.s32.totalorder %v578, 15
        %vm1350 = vcmp.eq.s32.totalorder %v579, 15
        %vm1351 = vcmp.eq.s32.totalorder %v580, 15
        %vm1352 = vcmp.eq.s32.totalorder %v581, 15
        %vm1353 = vcmp.eq.s32.totalorder %v582, 15
        %vm1354 = vcmp.eq.s32.totalorder %v583, 15
        %vm1355 = vcmp.eq.s32.totalorder %v584, 15
        %vm1356 = vcmp.eq.s32.totalorder %v585, 15
        %vm1357 = vcmp.eq.s32.totalorder %v586, 15
        %vm1358 = vcmp.eq.s32.totalorder %v587, 15
        %vm1359 = vcmp.eq.s32.totalorder %v588, 15
        %vm1360 = vcmp.eq.s32.totalorder %v589, 15
        %vm1361 = vcmp.eq.s32.totalorder %v590, 15
        %vm1362 = vcmp.eq.s32.totalorder %v591, 15
        %vm1363 = vcmp.eq.s32.totalorder %v592, 15
        %vm1364 = vcmp.eq.s32.totalorder %v593, 15
        %v1365 = vsel %vm1349, 1, 0
        %v1366 = vsel %vm1350, 1, 0
        %v1367 = vsel %vm1351, 1, 0
        %v1368 = vsel %vm1352, 1, 0
        %v1369 = vsel %vm1353, 1, 0
        %v1370 = vsel %vm1354, 1, 0
        %v1371 = vsel %vm1355, 1, 0
        %v1372 = vsel %vm1356, 1, 0
        %v1373 = vsel %vm1357, 1, 0
        %v1374 = vsel %vm1358, 1, 0
        %v1375 = vsel %vm1359, 1, 0
        %v1376 = vsel %vm1360, 1, 0
        %v1377 = vsel %vm1361, 1, 0
        %v1378 = vsel %vm1362, 1, 0
        %v1379 = vsel %vm1363, 1, 0
        %v1380 = vsel %vm1364, 1, 0
        %vm1381 = vcmp.eq.s32.totalorder %v1365, 1
        %vm1382 = vcmp.eq.s32.totalorder %v1366, 1
        %vm1383 = vcmp.eq.s32.totalorder %v1367, 1
        %vm1384 = vcmp.eq.s32.totalorder %v1368, 1
        %vm1385 = vcmp.eq.s32.totalorder %v1369, 1
        %vm1386 = vcmp.eq.s32.totalorder %v1370, 1
        %vm1387 = vcmp.eq.s32.totalorder %v1371, 1
        %vm1388 = vcmp.eq.s32.totalorder %v1372, 1
        %vm1389 = vcmp.eq.s32.totalorder %v1373, 1
        %vm1390 = vcmp.eq.s32.totalorder %v1374, 1
        %vm1391 = vcmp.eq.s32.totalorder %v1375, 1
        %vm1392 = vcmp.eq.s32.totalorder %v1376, 1
        %vm1393 = vcmp.eq.s32.totalorder %v1377, 1
        %vm1394 = vcmp.eq.s32.totalorder %v1378, 1
        %vm1395 = vcmp.eq.s32.totalorder %v1379, 1
        %vm1396 = vcmp.eq.s32.totalorder %v1380, 1
        %vm1397 = vmpackc.low %vm1381, %vm1381
        %vm1398 = vmpackc.low %vm1382, %vm1382
        %vm1399 = vmpackc.low %vm1383, %vm1383
        %vm1400 = vmpackc.low %vm1384, %vm1384
        %vm1401 = vmpackc.low %vm1385, %vm1385
        %vm1402 = vmpackc.low %vm1386, %vm1386
        %vm1403 = vmpackc.low %vm1387, %vm1387
        %vm1404 = vmpackc.low %vm1388, %vm1388
        %vm1405 = vmpackc.low %vm1389, %vm1389
        %vm1406 = vmpackc.low %vm1390, %vm1390
        %vm1407 = vmpackc.low %vm1391, %vm1391
        %vm1408 = vmpackc.low %vm1392, %vm1392
        %vm1409 = vmpackc.low %vm1393, %vm1393
        %vm1410 = vmpackc.low %vm1394, %vm1394
        %vm1411 = vmpackc.low %vm1395, %vm1395
        %vm1412 = vmpackc.low %vm1396, %vm1396
        %v1413 = vsel %vm1397, 65537, 0
        %v1414 = vsel %vm1398, 65537, 0
        %v1415 = vsel %vm1399, 65537, 0
        %v1416 = vsel %vm1400, 65537, 0
        %v1417 = vsel %vm1401, 65537, 0
        %v1418 = vsel %vm1402, 65537, 0
        %v1419 = vsel %vm1403, 65537, 0
        %v1420 = vsel %vm1404, 65537, 0
        %v1421 = vsel %vm1405, 65537, 0
        %v1422 = vsel %vm1406, 65537, 0
        %v1423 = vsel %vm1407, 65537, 0
        %v1424 = vsel %vm1408, 65537, 0
        %v1425 = vsel %vm1409, 65537, 0
        %v1426 = vsel %vm1410, 65537, 0
        %v1427 = vsel %vm1411, 65537, 0
        %v1428 = vsel %vm1412, 65537, 0
        %v1429 = vunpack.c.l.b16 %v1413
        %v1430 = vunpack.c.l.b16 %v1414
        %v1431 = vunpack.c.l.b16 %v1415
        %v1432 = vunpack.c.l.b16 %v1416
        %v1433 = vunpack.c.l.b16 %v1417
        %v1434 = vunpack.c.l.b16 %v1418
        %v1435 = vunpack.c.l.b16 %v1419
        %v1436 = vunpack.c.l.b16 %v1420
        %v1437 = vunpack.c.l.b16 %v1421
        %v1438 = vunpack.c.l.b16 %v1422
        %v1439 = vunpack.c.l.b16 %v1423
        %v1440 = vunpack.c.l.b16 %v1424
        %v1441 = vunpack.c.l.b16 %v1425
        %v1442 = vunpack.c.l.b16 %v1426
        %v1443 = vunpack.c.l.b16 %v1427
        %v1444 = vunpack.c.l.b16 %v1428
        %v1445 = vpack.c.b16 %v1430, %v1429
        %v1446 = vpack.c.b16 %v1432, %v1431
        %v1447 = vpack.c.b16 %v1434, %v1433
        %v1448 = vpack.c.b16 %v1436, %v1435
        %v1449 = vpack.c.b16 %v1438, %v1437
        %v1450 = vpack.c.b16 %v1440, %v1439
        %v1451 = vpack.c.b16 %v1442, %v1441
        %v1452 = vpack.c.b16 %v1444, %v1443
        %vm1453 = vcmp.ne.s16.totalorder %v1445, 0
        %vm1454 = vcmp.ne.s16.totalorder %v1446, 0
        %vm1455 = vcmp.ne.s16.totalorder %v1447, 0
        %vm1456 = vcmp.ne.s16.totalorder %v1448, 0
        %vm1457 = vcmp.ne.s16.totalorder %v1449, 0
        %vm1458 = vcmp.ne.s16.totalorder %v1450, 0
        %vm1459 = vcmp.ne.s16.totalorder %v1451, 0
        %vm1460 = vcmp.ne.s16.totalorder %v1452, 0
        %v1461 = vsel %vm1453, 0, %v1286
        %v1462 = vsel %vm1453, 0, %v1290
        %v1463 = vsel %vm1454, 0, %v1293
        %v1464 = vsel %vm1454, 0, %v1296
        %v1465 = vsel %vm1455, 0, %v1299
        %v1466 = vsel %vm1455, 0, %v1302
        %v1467 = vsel %vm1456, 0, %v1305
        %v1468 = vsel %vm1456, 0, %v1308
        %v1469 = vsel %vm1457, 0, %v1311
        %v1470 = vsel %vm1457, 0, %v1314
        %v1471 = vsel %vm1458, 0, %v1317
        %v1472 = vsel %vm1458, 0, %v1320
        %v1473 = vsel %vm1459, 0, %v1323
        %v1474 = vsel %vm1459, 0, %v1326
        %v1475 = vsel %vm1460, 0, %v1347
        %v1476 = vsel %vm1460, 0, %v1348
        %s1477 = scalar_lea.vmem [#allocation6], 192
        %v1478 = vld [vmem:[%s1477] sm:$0xf]
        %v1479 = vld [vmem:[%s1477 + $0x4] sm:$0xf]
        %v1480 = vld [vmem:[%s1477 + $0x8] sm:$0xf]
        %v1481 = vld [vmem:[%s1477 + $0xc] sm:$0xf]
        %v1482 = vld [vmem:[%s1477 + $0x10] sm:$0xf]
        %v1483 = vld [vmem:[%s1477 + $0x14] sm:$0xf]
        %v1484 = vld [vmem:[%s1477 + $0x18] sm:$0xf]
        %v1485 = vld [vmem:[%s1477 + $0x1c] sm:$0xf]
        %v1486 = vld [vmem:[%s1477 + $0x20] sm:$0xf]
        %v1487 = vld [vmem:[%s1477 + $0x24] sm:$0xf]
        %v1488 = vld [vmem:[%s1477 + $0x28] sm:$0xf]
        %v1489 = vld [vmem:[%s1477 + $0x2c] sm:$0xf]
        %v1490 = vld [vmem:[%s1477 + $0x30] sm:$0xf]
        %v1491 = vld [vmem:[%s1477 + $0x34] sm:$0xf]
        %v1492 = vld [vmem:[%s1477 + $0x38] sm:$0xf]
        %v1493 = vld [vmem:[%s1477 + $0x3c] sm:$0xf]
        %v1494 = vld [vmem:[%s1477 + $0x40] sm:$0xf]
        %v1495 = vld [vmem:[%s1477 + $0x44] sm:$0xf]
        %v1496 = vld [vmem:[%s1477 + $0x48] sm:$0xf]
        %v1497 = vld [vmem:[%s1477 + $0x4c] sm:$0xf]
        %v1498 = vld [vmem:[%s1477 + $0x50] sm:$0xf]
        %v1499 = vld [vmem:[%s1477 + $0x54] sm:$0xf]
        %v1500 = vld [vmem:[%s1477 + $0x58] sm:$0xf]
        %v1501 = vld [vmem:[%s1477 + $0x5c] sm:$0xf]
        %v1526 = vunpack.c.l.b16 %v1478
        %v1527 = vunpack.c.l.b16 %v1479
        %v1528 = vunpack.c.l.b16 %v1480
        %v1529 = vunpack.c.l.b16 %v1481
        %v1530 = vunpack.c.l.b16 %v1482
        %v1531 = vunpack.c.l.b16 %v1483
        %v1532 = vunpack.c.l.b16 %v1484
        %v1533 = vunpack.c.l.b16 %v1485
        %v1534 = vunpack.c.l.b16 %v1486
        %v1535 = vunpack.c.l.b16 %v1487
        %v1536 = vunpack.c.l.b16 %v1488
        %v1537 = vunpack.c.l.b16 %v1489
        %v1538 = vunpack.c.l.b16 %v1490
        %v1539 = vunpack.c.l.b16 %v1491
        %v1540 = vunpack.c.l.b16 %v1492
        %v1541 = vunpack.c.l.b16 %v1493
        %v1542 = vunpack.c.l.b16 %v1494
        %v1543 = vunpack.c.l.b16 %v1495
        %v1544 = vunpack.c.l.b16 %v1496
        %v1545 = vunpack.c.l.b16 %v1497
        %v1546 = vunpack.c.l.b16 %v1498
        %v1547 = vunpack.c.l.b16 %v1499
        %v1548 = vunpack.c.l.b16 %v1500
        %v1549 = vunpack.c.l.b16 %v1501
        %v1550 = vpack.c.b16 %v1527, %v1526
        %v1551 = vpack.c.b16 %v1529, %v1528
        %v1552 = vpack.c.b16 %v1531, %v1530
        %v1553 = vpack.c.b16 %v1533, %v1532
        %v1554 = vpack.c.b16 %v1535, %v1534
        %v1555 = vpack.c.b16 %v1537, %v1536
        %v1556 = vpack.c.b16 %v1539, %v1538
        %v1557 = vpack.c.b16 %v1541, %v1540
        %v1558 = vpack.c.b16 %v1543, %v1542
        %v1559 = vpack.c.b16 %v1545, %v1544
        %v1560 = vpack.c.b16 %v1547, %v1546
        %v1561 = vpack.c.b16 %v1549, %v1548
        %v1575 = vsel %vm264, %v1462, 0
        %v1578 = vsel %vm264, %v1464, 0
        %v1581 = vsel %vm264, %v1466, 0
        %v1584 = vsel %vm264, %v1468, 0
        %v1587 = vsel %vm264, %v1470, 0
        %v1590 = vsel %vm264, %v1472, 0
        %v1593 = vsel %vm264, %v1474, 0
        %v1596 = vsel %vm264, %v1476, 0
        %1598 = vmatprep.subr.bf16.mxu0 0
        %1599 = vmatpush1.bf16.msra.mxu0 %v1550
        %1600 = vmatprep.subr.bf16.mxu0 0
        %1601 = vmatpush1.bf16.msra.mxu0 %v1551
        %1602 = vmatprep.subr.bf16.mxu0 0
        %1603 = vmatpush1.bf16.msra.mxu0 %v1552
        %1604 = vmatprep.subr.bf16.mxu0 0
        %1605 = vmatpush1.bf16.msra.mxu0 %v1553
        %1606 = vmatprep.subr.bf16.mxu0 0
        %1607 = vmatpush1.bf16.msra.mxu0 %v1554
        %1608 = vmatprep.subr.bf16.mxu0 0
        %1609 = vmatpush1.bf16.msra.mxu0 %v1555
        %1610 = vmatprep.subr.bf16.mxu0 0
        %1611 = vmatpush1.bf16.msra.mxu0 %v1556
        %1612 = vmatprep.subr.bf16.mxu0 0
        %1613 = vmatpush1.bf16.msra.mxu0 %v1557
        %1614 = vmatprep.subr.bf16.mxu0 0
        %1615 = vmatpush1.bf16.msra.mxu0 %v1558
        %1616 = vmatprep.subr.bf16.mxu0 0
        %1617 = vmatpush1.bf16.msra.mxu0 %v1559
        %1618 = vmatprep.subr.bf16.mxu0 0
        %1619 = vmatpush1.bf16.msra.mxu0 %v1560
        %1620 = vmatprep.subr.bf16.mxu0 0
        %1621 = vmatpush1.bf16.msra.mxu0 %v1561
        %1622 = vmatprep.subr.bf16.mxu0 0
        %1623 = vmatpush1.bf16.msra.mxu0 0
        %1624 = vmatprep.subr.bf16.mxu0 0
        %1625 = vmatpush1.bf16.msra.mxu0 0
        %1626 = vmatprep.subr.bf16.mxu0 0
        %1627 = vmatpush1.bf16.msra.mxu0 0
        %1628 = vmatprep.subr.bf16.mxu0 0
        %1629 = vmatpush1.bf16.msra.mxu0 0
        %1630 = vmatprep.mubr.bf16.mxu0 %v1575
        %1631 = vmatmul.mubr.bf16.gmra.mrb[0].mxu0 %v1461
        %v1632 = vpop.f32.mrb[0].mxu0
        %v1633 = vadd.f32 0.0, %v1632
        %v1634 = vpop.f32.mrb[0].mxu0
        %v1635 = vpop.f32.mrb[0].mxu0
        %v1636 = vadd.f32 0.0, %v1635
        %v1637 = vpop.f32.mrb[0].mxu0
        %1638 = vmatprep.mubr.bf16.mxu0 %v1578
        %1639 = vmatmul.mubr.bf16.gmra.mrb[0].mxu0 %v1463
        %v1640 = vpop.f32.mrb[0].mxu0
        %v1641 = vadd.f32 0.0, %v1640
        %v1642 = vpop.f32.mrb[0].mxu0
        %v1643 = vpop.f32.mrb[0].mxu0
        %v1644 = vadd.f32 0.0, %v1643
        %v1645 = vpop.f32.mrb[0].mxu0
        %1646 = vmatprep.mubr.bf16.mxu0 %v1581
        %1647 = vmatmul.mubr.bf16.gmra.mrb[0].mxu0 %v1465
        %v1648 = vpop.f32.mrb[0].mxu0
        %v1649 = vadd.f32 0.0, %v1648
        %v1650 = vpop.f32.mrb[0].mxu0
        %v1651 = vpop.f32.mrb[0].mxu0
        %v1652 = vadd.f32 0.0, %v1651
        %v1653 = vpop.f32.mrb[0].mxu0
        %1654 = vmatprep.mubr.bf16.mxu0 %v1584
        %1655 = vmatmul.mubr.bf16.gmra.mrb[0].mxu0 %v1467
        %v1656 = vpop.f32.mrb[0].mxu0
        %v1657 = vadd.f32 0.0, %v1656
        %v1658 = vpop.f32.mrb[0].mxu0
        %v1659 = vpop.f32.mrb[0].mxu0
        %v1660 = vadd.f32 0.0, %v1659
        %v1661 = vpop.f32.mrb[0].mxu0
        %1662 = vmatprep.mubr.bf16.mxu0 %v1587
        %1663 = vmatmul.mubr.bf16.gmra.mrb[0].mxu0 %v1469
        %v1664 = vpop.f32.mrb[0].mxu0
        %v1665 = vadd.f32 0.0, %v1664
        %v1666 = vpop.f32.mrb[0].mxu0
        %v1667 = vpop.f32.mrb[0].mxu0
        %v1668 = vadd.f32 0.0, %v1667
        %v1669 = vpop.f32.mrb[0].mxu0
        %1670 = vmatprep.mubr.bf16.mxu0 %v1590
        %1671 = vmatmul.mubr.bf16.gmra.mrb[0].mxu0 %v1471
        %v1672 = vpop.f32.mrb[0].mxu0
        %v1673 = vadd.f32 0.0, %v1672
        %v1674 = vpop.f32.mrb[0].mxu0
        %v1675 = vpop.f32.mrb[0].mxu0
        %v1676 = vadd.f32 0.0, %v1675
        %v1677 = vpop.f32.mrb[0].mxu0
        %1678 = vmatprep.mubr.bf16.mxu0 %v1593
        %1679 = vmatmul.mubr.bf16.gmra.mrb[0].mxu0 %v1473
        %v1680 = vpop.f32.mrb[0].mxu0
        %v1681 = vadd.f32 0.0, %v1680
        %v1682 = vpop.f32.mrb[0].mxu0
        %v1683 = vpop.f32.mrb[0].mxu0
        %v1684 = vadd.f32 0.0, %v1683
        %v1685 = vpop.f32.mrb[0].mxu0
        %1686 = vmatprep.mubr.bf16.mxu0 %v1596
        %1687 = vmatmul.mubr.bf16.gmra.mrb[0].mxu0 %v1475
        %v1688 = vpop.f32.mrb[0].mxu0
        %v1689 = vadd.f32 0.0, %v1688
        %v1690 = vpop.f32.mrb[0].mxu0
        %v1691 = vpop.f32.mrb[0].mxu0
        %v1692 = vadd.f32 0.0, %v1691
        %v1693 = vpop.f32.mrb[0].mxu0
        %1694 = vdwg.mxu0
        %v1695 = vadd.f32 %v1220, %v1633
        %v1696 = vadd.f32 %v1223, %v1636
        %v1697 = vadd.f32 %v1228, %v1641
        %v1698 = vadd.f32 %v1231, %v1644
        %v1699 = vadd.f32 %v1236, %v1649
        %v1700 = vadd.f32 %v1239, %v1652
        %v1701 = vadd.f32 %v1244, %v1657
        %v1702 = vadd.f32 %v1247, %v1660
        %v1703 = vadd.f32 %v1252, %v1665
        %v1704 = vadd.f32 %v1255, %v1668
        %v1705 = vadd.f32 %v1260, %v1673
        %v1706 = vadd.f32 %v1263, %v1676
        %v1707 = vadd.f32 %v1268, %v1681
        %v1708 = vadd.f32 %v1271, %v1684
        %v1709 = vadd.f32 %v1276, %v1689
        %v1710 = vadd.f32 %v1279, %v1692
        %1711 = vst [vmem:[%s190] sm:$0xff] %v1695
        %1712 = vst [vmem:[%s190 + $0x8] sm:$0xff] %v1696
        %1713 = vst [vmem:[%s190 + $0x10] sm:$0xff] %v1697
        %1714 = vst [vmem:[%s190 + $0x18] sm:$0xff] %v1698
        %1715 = vst [vmem:[%s190 + $0x20] sm:$0xff] %v1699
        %1716 = vst [vmem:[%s190 + $0x28] sm:$0xff] %v1700
        %1717 = vst [vmem:[%s190 + $0x30] sm:$0xff] %v1701
        %1718 = vst [vmem:[%s190 + $0x38] sm:$0xff] %v1702
        %1719 = vst [vmem:[%s190 + $0x40] sm:$0xff] %v1703
        %1720 = vst [vmem:[%s190 + $0x48] sm:$0xff] %v1704
        %1721 = vst [vmem:[%s190 + $0x50] sm:$0xff] %v1705
        %1722 = vst [vmem:[%s190 + $0x58] sm:$0xff] %v1706
        %1723 = vst [vmem:[%s190 + $0x60] sm:$0xff] %v1707
        %1724 = vst [vmem:[%s190 + $0x68] sm:$0xff] %v1708
        %1725 = vst [vmem:[%s190 + $0x70] sm:$0xff] %v1709
        %1726 = vst [vmem:[%s190 + $0x78] sm:$0xff] %v1710
        %s1727 = sand.u32 %s89, 1
        %s1728 = scalar_lea.sflag [#allocation5], %s1727
        %s1729 = sand.u32 %s89, 1
        %s1730 = smul.addr %s1729, 128
        %s1731 = scalar_lea.vmem [#allocation8], %s1730
        // Predicated region
        $region53: #{tpu_custom_call.1} parent=27 // pred_check
          %p1732 = pneg %p99
        $region54: #{tpu_custom_call.1} parent=27 // pred_check_branch
          %1734 = sbr.rel (%p1732) target = $region56
        $region55: #{tpu_custom_call.1} parent=27 // pred_region
          %s1735 = smul.u32 8, %s25
          %s1737 = ssub.s32 2048, 2048
          %1738 = vsyncadd %s1728, %s1737
          %s1739 = smul.addr %s1735, 2
          %s1740 = smul.addr %s24, 32
          %s1741 = sadd.s32 %s1739, %s1740
          %s1742 = smul.addr %s1741, 128
          %s1743 = scalar_lea.hbm %s2, %s1742
          %s1744 = sshll.u32 %s1731, 4
          %s1745 = int_to_ptr.vmem [resolvable:$true] %s1744
          %1750 = dma.vmem_to_hbm [thread:$0]  %s1745, 2048, %s1743, %s1728, 128, 128, 8
        $region56: #{tpu_custom_call.1} parent=27 // pred_fallthru
          _
      $region28: #{tpu_custom_call.1} parent=5 // pred_fallthru
        _
      %p1751 = scmp.le.s32.totalorder 2, %s15
      // Predicated region
      $region57: #{tpu_custom_call.1} parent=5 // pred_check
        %p1752 = pneg %p1751
      $region58: #{tpu_custom_call.1} parent=5 // pred_check_branch
        %1754 = sbr.rel (%p1752) target = $region60
      $region59: #{tpu_custom_call.1} parent=5 // pred_region
        %s1755 = ssub.s32 %s15, 2
        // Predicated region
        $region61: #{tpu_custom_call.1} parent=59 // pred_check
          %p1756 = pneg %p105
        $region62: #{tpu_custom_call.1} parent=59 // pred_check_branch
          %1758 = sbr.rel (%p1756) target = $region64
        $region63: #{tpu_custom_call.1} parent=59 // pred_region
          %s1759 = sand.u32 %s90, 1
          %s1760 = scalar_lea.sflag [#allocation5], %s1759
          %s1761 = sand.u32 %s90, 1
          %s1762 = smul.addr %s1761, 128
          %s1763 = scalar_lea.vmem [#allocation8], %s1762
          %1764 = dma.done %s1760, 2048
        $region64: #{tpu_custom_call.1} parent=59 // pred_fallthru
          _
      $region60: #{tpu_custom_call.1} parent=5 // pred_fallthru
        _
    $region6: #{tpu_custom_call.1} parent=1 // loop_footer
      %s19 = sadd.s32 1, %s15
    $region7: #{tpu_custom_call.1} parent=1 // loop_footer_branch
      %14 = sbr.rel target = $region3
    $region8: #{tpu_custom_call.1} parent=1 // loop_exit
      _
    %1765 = vsyncpa [#allocation4], 1
    %s1766 = scalar_lea.sflag [#allocation4], 1
    %1767 = vsyncpa %s1766, 1
    %1768 = vsyncpa [#allocation7], 1
    %1769 = vsyncpa [#allocation5], 1
    %s1770 = scalar_lea.sflag [#allocation5], 1
    %1771 = vsyncpa %s1770, 1

</llo_original>
